<compile_context>
chip_gen: v7x
topology: tpu7x:2x2x1
jax: 0.10.0
libtpu: 0.0.40
codegen_flags: <defaults>
</compile_context>

<pallas_src>
import jax
import jax.numpy as jnp
from jax.experimental import pallas as pl
from jax.experimental.pallas import tpu as pltpu


def _silu(x):
    return x * jax.nn.sigmoid(x)


def _softplus(x):
    # thresholded like torch.nn.functional.softplus (beta=1, threshold=20)
    return jnp.where(x > 20.0, x, jnp.log1p(jnp.exp(x)))


def _round8(n):
    return ((n + 7) // 8) * 8


def _pack_rows(pieces, width):
    """Stack 2-D (rows, w<=width) arrays into one (R, width) slab; each piece starts at a
    sublane-tile-aligned (multiple-of-8) row offset. Returns (slab, {name: row_offset})."""
    chunks, offsets, cur = [], {}, 0
    for name, a in pieces:
        a = jnp.asarray(a, jnp.float32)
        r, w = a.shape
        if w < width:
            a = jnp.pad(a, ((0, 0), (0, width - w)))
        offsets[name] = cur
        chunks.append(a)
        cur += r
        pad = _round8(cur) - cur
        if pad:
            chunks.append(jnp.zeros((pad, width), jnp.float32))
            cur += pad
    return jnp.concatenate(chunks, axis=0), offsets


def mamba_classifier_forward(x, params):
    """x: (B, L, d_model) float32 -> logits (B, num_classes) float32."""
    B, L, Dm = x.shape
    K, ED = params["conv_w"].shape
    N = params["w_B"].shape[1]
    C = params["fc_w"].shape[1]
    ED2 = 2 * ED
    NP = 2 * N + ED
    f32 = jnp.float32

    # ---- host-side fusions & slab packing (3 input DMAs total: x + 2 slabs) ----
    w_in = params["rms_w"].T * jnp.concatenate(
        [params["w_in_x"], params["w_in_z"]], axis=1)                  # (Dm, 2*ED), RMS folded
    w_dbc = jnp.concatenate(
        [params["w_B"], params["w_C"], params["w_delta"] @ params["dt_w"]], axis=1)  # (ED, 2N+ED)
    w_head = params["w_out"] @ params["fc_w"]                          # (ED, C) fused head
    a_negT = (-jnp.exp(params["A_log"])).T                             # (N, ED)

    p64, o64 = _pack_rows(
        [("conv_w", params["conv_w"]), ("a_negT", a_negT),
         ("conv_b", params["conv_b"]), ("dt_b", params["dt_b"]), ("D", params["D"])],
        width=ED)
    p128, o128 = _pack_rows(
        [("w_in", w_in), ("w_dbc", w_dbc), ("w_head", w_head), ("fc_b", params["fc_b"])],
        width=max(ED2, NP, C))

    def kernel(x_ref, p64_ref, p128_ref, o_ref):
        # ---- RMSNorm (eps=1e-5) over the Dm features, flat (B*L, Dm) rows ----
        xr = x_ref[...].reshape(B * L, Dm)
        ms = xr[:, 0:1] * xr[:, 0:1]
        for d in range(1, Dm):
            ms = ms + xr[:, d:d + 1] * xr[:, d:d + 1]
        inv = jax.lax.rsqrt(ms * (1.0 / Dm) + 1e-5)                    # (B*L, 1)

        # ---- in_proj (RMS weight folded in): Dm broadcast-MADs on the VPU ----
        w_in_k = p128_ref[o128["w_in"]:o128["w_in"] + Dm, :ED2]        # (Dm, 2*ED)
        x_inz = (xr[:, 0:1] * inv) * w_in_k[0:1, :]
        for d in range(1, Dm):
            x_inz = x_inz + (xr[:, d:d + 1] * inv) * w_in_k[d:d + 1, :]
        x_in = x_inz[:, :ED]                                           # (B*L, ED) conv branch

        # ---- causal depthwise conv: XLU sublane rotations + wrap mask ----
        pos = jax.lax.broadcasted_iota(jnp.int32, (B, L, ED), 1).reshape(B * L, ED)
        acc = x_in * p64_ref[o64["conv_w"] + K - 1:o64["conv_w"] + K, :]     # tap s = 0
        for s in range(1, min(K, L)):        # taps reading only the zero padding skipped
            wk = p64_ref[o64["conv_w"] + K - 1 - s:o64["conv_w"] + K - s, :]  # (1, ED)
            xs = pltpu.roll(x_in, shift=s, axis=0)      # row t <- row t-s (wraps; masked)
            acc = acc + jnp.where(pos >= s, xs * wk, 0.0)
        x_act = _silu(acc + p64_ref[o64["conv_b"]:o64["conv_b"] + 1, :])      # (B*L, ED)

        # ---- fused x_proj: one MXU pass, columns [w_B | w_C | w_delta @ dt_w] ----
        dbc = jnp.dot(x_act, p128_ref[o128["w_dbc"]:o128["w_dbc"] + ED, :NP],
                      preferred_element_type=f32)                      # (B*L, 2N+ED)
        Bm = dbc[:, :N]                                                # (B*L, N)
        delta = _softplus(dbc[:, 2 * N:] + p64_ref[o64["dt_b"]:o64["dt_b"] + 1, :])
        dx = delta * x_act                                             # (B*L, ED)

        # ---- precompute scan operands for ALL timesteps (exp hoisted off the chain) ----
        a_neg = p64_ref[o64["a_negT"]:o64["a_negT"] + N, :]            # (N, ED)
        dA = jnp.exp(delta.reshape(B, L, ED)[:, :, None, :] * a_neg[None, None, :, :])
        dBx = Bm.reshape(B, L, N)[:, :, :, None] * dx.reshape(B, L, ED)[:, :, None, :]
        # dA, dBx: (B, L, N, ED) ~ 2 x 128 KiB at demo sizes — trivially fits VMEM.

        # ---- selective scan: two VPU FMAs per (unrolled) step, h carried as (B, N, ED) --
        h = dBx[:, 0]
        for t in range(1, L):                # L static & small -> unrolled
            h = dA[:, t] * h + dBx[:, t]

        # ---- last token only: C read-out, D skip, gate, fused out_proj·fc head ----
        def last_rows(a):                    # (B*L, W) -> (B, W)
            rows = [a[b * L + L - 1:b * L + L, :] for b in range(B)]
            return rows[0] if B == 1 else jnp.concatenate(rows, axis=0)

        c_last = last_rows(dbc)[:, N:2 * N]                            # (B, N)
        y = jnp.sum(h * c_last[:, :, None], axis=1)                    # (B, ED)
        y = y + p64_ref[o64["D"]:o64["D"] + 1, :] * last_rows(x_act)   # D skip connection
        y = y * _silu(last_rows(x_inz)[:, ED:])                        # gate
        logits = (jnp.dot(y, p128_ref[o128["w_head"]:o128["w_head"] + ED, :],
                          preferred_element_type=f32)
                  + p128_ref[o128["fc_b"]:o128["fc_b"] + 1, :])        # (B, Wp), zero-padded
        o_ref[...] = logits[:, :C]

    return pl.pallas_call(
        kernel,
        out_shape=jax.ShapeDtypeStruct((B, C), f32),
        grid_spec=pltpu.PrefetchScalarGridSpec(
            num_scalar_prefetch=0,
            grid=(1,),                       # whole (toy-sized) batch in one grid step
            in_specs=[pl.BlockSpec((B, L, Dm), lambda i: (0, 0, 0)),
                      pl.BlockSpec(p64.shape, lambda i: (0, 0)),
                      pl.BlockSpec(p128.shape, lambda i: (0, 0))],
            out_specs=pl.BlockSpec((B, C), lambda i: (0, 0)),
        ),
        compiler_params=pltpu.CompilerParams(dimension_semantics=("arbitrary",)),
    )(x, p64, p128)


def reference_forward(x, p):
    """Pure-JAX reference mirroring the module semantics (full, un-fused compute)."""
    hi = jax.lax.Precision.HIGHEST
    B, L, _ = x.shape
    K, ED = p["conv_w"].shape

    ms = jnp.mean(x * x, axis=-1, keepdims=True)
    xn = x * jax.lax.rsqrt(ms + 1e-5) * p["rms_w"]
    x_in = jnp.einsum("bld,de->ble", xn, p["w_in_x"], precision=hi)
    z = jnp.einsum("bld,de->ble", xn, p["w_in_z"], precision=hi)

    xpad = jnp.pad(x_in, ((0, 0), (K - 1, 0), (0, 0)))
    x_conv = sum(p["conv_w"][k][None, None, :] * xpad[:, k:k + L, :] for k in range(K))
    x_conv = x_conv + p["conv_b"][None, :, :]
    x_act = _silu(x_conv)

    d_raw = jnp.einsum("ble,er->blr", x_act, p["w_delta"], precision=hi)
    Bm = jnp.einsum("ble,en->bln", x_act, p["w_B"], precision=hi)
    Cm = jnp.einsum("ble,en->bln", x_act, p["w_C"], precision=hi)
    delta = _softplus(jnp.einsum("blr,re->ble", d_raw, p["dt_w"], precision=hi)
                      + p["dt_b"][None, :, :])

    A = -jnp.exp(p["A_log"])
    N = A.shape[1]
    dA = jnp.exp(delta[..., None] * A[None, None, :, :])
    dBx = delta[..., None] * Bm[:, :, None, :] * x_act[..., None]

    h = jnp.zeros((B, ED, N), jnp.float32)
    ys = []
    for t in range(L):
        h = dA[:, t] * h + dBx[:, t]
        ys.append(jnp.sum(h * Cm[:, t, None, :], axis=-1))
    y = jnp.stack(ys, axis=1) + p["D"][None, :, :] * x_act
    y = y * _silu(z)

    hout = jnp.einsum("ble,ef->blf", y, p["w_out"], precision=hi)
    last = hout[:, -1, :]
    return jnp.dot(last, p["fc_w"], precision=hi) + p["fc_b"]


def init_params(key, Dm, ED, N, K, C, dt_rank):
    ks = jax.random.split(key, 12)

    def unif(k, shape, fan_in):
        b = 1.0 / (fan_in ** 0.5)
        return jax.random.uniform(k, shape, jnp.float32, -b, b)

    a_row = jnp.log(jnp.arange(1, N + 1, dtype=jnp.float32))
    return {
        "rms_w": jnp.ones((1, Dm), jnp.float32),
        "w_in_x": unif(ks[0], (Dm, ED), Dm),
        "w_in_z": unif(ks[1], (Dm, ED), Dm),
        "conv_w": unif(ks[2], (K, ED), K),       # torch Conv1d weight (ED,1,K) transposed
        "conv_b": unif(ks[3], (1, ED), K),
        "w_delta": unif(ks[4], (ED, dt_rank), ED),
        "w_B": unif(ks[5], (ED, N), ED),
        "w_C": unif(ks[6], (ED, N), ED),
        "dt_w": unif(ks[7], (dt_rank, ED), dt_rank),
        "dt_b": unif(ks[8], (1, ED), ED),
        "A_log": a_row[None, :] * jnp.ones((ED, 1), jnp.float32),
        "D": jnp.ones((1, ED), jnp.float32),
        "w_out": unif(ks[9], (ED, ED), ED),
        "fc_w": unif(ks[10], (ED, C), ED),
        "fc_b": unif(ks[11], (1, C), ED),
    }


if __name__ == "__main__":
    # sizes implied by the script: input_size=2, hidden_size(d_inner)=64, d_state=32,
    # d_conv=16, dt_rank=1, num_classes=2; small batch/seq chosen for the demo.
    B, L = 2, 8
    Dm, ED, N, K, C, dt_rank = 2, 64, 32, 16, 2, 1

    key = jax.random.PRNGKey(0)
    kx, kp = jax.random.split(key)
    params = init_params(kp, Dm, ED, N, K, C, dt_rank)
    x = jax.random.normal(kx, (B, L, Dm), jnp.float32)

    logits = mamba_classifier_forward(x, params)
    logits = jax.block_until_ready(logits)

    ref = reference_forward(x, params)
    assert logits.shape == (B, C)
    assert bool(jnp.all(jnp.isfinite(logits)))
    assert jnp.allclose(logits, ref, atol=1e-2, rtol=1e-2), (logits, ref)

    print("KERNEL_OK")
</pallas_src>

<mosaic_0001>
module attributes {stable_mosaic.version = 11 : i64} {
  func.func @kernel(%arg0: i32, %arg1: memref<2x8x2xf32, #tpu.memory_space<vmem>>, %arg2: memref<72x64xf32, #tpu.memory_space<vmem>>, %arg3: memref<144x128xf32, #tpu.memory_space<vmem>>, %arg4: memref<2x2xf32, #tpu.memory_space<vmem>>) attributes {dimension_semantics = [#tpu.dimension_semantics<arbitrary>], iteration_bounds = array<i64: 1>, scalar_prefetch = 0 : i64, scratch_operands = 0 : i64, tpu.core_type = #tpu.core_type<tc>, window_params = [{pipeline_mode = #tpu.pipeline_mode<synchronous>, transform_indices = @transform_0, window_bounds = array<i64: 2, 8, 2>}, {pipeline_mode = #tpu.pipeline_mode<synchronous>, transform_indices = @transform_1, window_bounds = array<i64: 72, 64>}, {pipeline_mode = #tpu.pipeline_mode<synchronous>, transform_indices = @transform_2, window_bounds = array<i64: 144, 128>}, {pipeline_mode = #tpu.pipeline_mode<synchronous>, transform_indices = @transform_3, window_bounds = array<i64: 2, 2>}]} {
    %c0 = arith.constant 0 : index
    %c0_0 = arith.constant 0 : index
    %c0_1 = arith.constant 0 : index
    %0 = vector.load %arg1[%c0, %c0_0, %c0_1] : memref<2x8x2xf32, #tpu.memory_space<vmem>>, vector<2x8x2xf32>
    %1 = vector.shape_cast %0 : vector<2x8x2xf32> to vector<16x2xf32>
    %2 = vector.extract_strided_slice %1 {offsets = [0, 0], sizes = [16, 1], strides = [1, 1]} : vector<16x2xf32> to vector<16x1xf32>
    %3 = vector.extract_strided_slice %1 {offsets = [0, 0], sizes = [16, 1], strides = [1, 1]} : vector<16x2xf32> to vector<16x1xf32>
    %4 = arith.mulf %2, %3 : vector<16x1xf32>
    %5 = vector.extract_strided_slice %1 {offsets = [0, 1], sizes = [16, 1], strides = [1, 1]} : vector<16x2xf32> to vector<16x1xf32>
    %6 = vector.extract_strided_slice %1 {offsets = [0, 1], sizes = [16, 1], strides = [1, 1]} : vector<16x2xf32> to vector<16x1xf32>
    %7 = arith.mulf %5, %6 : vector<16x1xf32>
    %8 = arith.addf %4, %7 : vector<16x1xf32>
    %cst = arith.constant 5.000000e-01 : f32
    %9 = vector.broadcast %cst : f32 to vector<16x1xf32>
    %10 = arith.mulf %8, %9 : vector<16x1xf32>
    %cst_2 = arith.constant 9.99999974E-6 : f32
    %11 = vector.broadcast %cst_2 : f32 to vector<16x1xf32>
    %12 = arith.addf %10, %11 : vector<16x1xf32>
    %13 = math.rsqrt %12 : vector<16x1xf32>
    %c0_3 = arith.constant 0 : index
    %c0_4 = arith.constant 0 : index
    %14 = vector.load %arg3[%c0_3, %c0_4] : memref<144x128xf32, #tpu.memory_space<vmem>>, vector<2x128xf32>
    %15 = vector.extract_strided_slice %1 {offsets = [0, 0], sizes = [16, 1], strides = [1, 1]} : vector<16x2xf32> to vector<16x1xf32>
    %16 = arith.mulf %15, %13 : vector<16x1xf32>
    %17 = vector.extract_strided_slice %14 {offsets = [0, 0], sizes = [1, 128], strides = [1, 1]} : vector<2x128xf32> to vector<1x128xf32>
    %18 = vector.broadcast %16 : vector<16x1xf32> to vector<16x128xf32>
    %19 = vector.broadcast %17 : vector<1x128xf32> to vector<16x128xf32>
    %20 = arith.mulf %18, %19 : vector<16x128xf32>
    %21 = vector.extract_strided_slice %1 {offsets = [0, 1], sizes = [16, 1], strides = [1, 1]} : vector<16x2xf32> to vector<16x1xf32>
    %22 = arith.mulf %21, %13 : vector<16x1xf32>
    %23 = vector.extract_strided_slice %14 {offsets = [1, 0], sizes = [1, 128], strides = [1, 1]} : vector<2x128xf32> to vector<1x128xf32>
    %24 = vector.broadcast %22 : vector<16x1xf32> to vector<16x128xf32>
    %25 = vector.broadcast %23 : vector<1x128xf32> to vector<16x128xf32>
    %26 = arith.mulf %24, %25 : vector<16x128xf32>
    %27 = arith.addf %20, %26 : vector<16x128xf32>
    %28 = vector.extract_strided_slice %27 {offsets = [0, 0], sizes = [16, 64], strides = [1, 1]} : vector<16x128xf32> to vector<16x64xf32>
    %29 = tpu.iota {dimensions = array<i32: 1>} : vector<2x8x64xi32>
    %30 = vector.shape_cast %29 : vector<2x8x64xi32> to vector<16x64xi32>
    %c15 = arith.constant 15 : index
    %c0_5 = arith.constant 0 : index
    %31 = vector.load %arg2[%c15, %c0_5] : memref<72x64xf32, #tpu.memory_space<vmem>>, vector<1x64xf32>
    %32 = vector.broadcast %31 : vector<1x64xf32> to vector<16x64xf32>
    %33 = arith.mulf %28, %32 : vector<16x64xf32>
    %c14 = arith.constant 14 : index
    %c0_6 = arith.constant 0 : index
    %34 = vector.load %arg2[%c14, %c0_6] : memref<72x64xf32, #tpu.memory_space<vmem>>, vector<1x64xf32>
    %c1_i32 = arith.constant 1 : i32
    %35 = tpu.dynamic_rotate %28 by %c1_i32 dim 0 : vector<16x64xf32>, i32 -> vector<16x64xf32>
    %c1_i32_7 = arith.constant 1 : i32
    %36 = vector.broadcast %c1_i32_7 : i32 to vector<16x64xi32>
    %37 = arith.cmpi sge, %30, %36 : vector<16x64xi32>
    %38 = vector.broadcast %34 : vector<1x64xf32> to vector<16x64xf32>
    %39 = arith.mulf %35, %38 : vector<16x64xf32>
    %cst_8 = arith.constant 0.000000e+00 : f32
    %40 = vector.broadcast %cst_8 : f32 to vector<16x64xf32>
    %41 = arith.select %37, %39, %40 : vector<16x64xi1>, vector<16x64xf32>
    %42 = arith.addf %33, %41 : vector<16x64xf32>
    %c13 = arith.constant 13 : index
    %c0_9 = arith.constant 0 : index
    %43 = vector.load %arg2[%c13, %c0_9] : memref<72x64xf32, #tpu.memory_space<vmem>>, vector<1x64xf32>
    %c2_i32 = arith.constant 2 : i32
    %44 = tpu.dynamic_rotate %28 by %c2_i32 dim 0 : vector<16x64xf32>, i32 -> vector<16x64xf32>
    %c2_i32_10 = arith.constant 2 : i32
    %45 = vector.broadcast %c2_i32_10 : i32 to vector<16x64xi32>
    %46 = arith.cmpi sge, %30, %45 : vector<16x64xi32>
    %47 = vector.broadcast %43 : vector<1x64xf32> to vector<16x64xf32>
    %48 = arith.mulf %44, %47 : vector<16x64xf32>
    %cst_11 = arith.constant 0.000000e+00 : f32
    %49 = vector.broadcast %cst_11 : f32 to vector<16x64xf32>
    %50 = arith.select %46, %48, %49 : vector<16x64xi1>, vector<16x64xf32>
    %51 = arith.addf %42, %50 : vector<16x64xf32>
    %c12 = arith.constant 12 : index
    %c0_12 = arith.constant 0 : index
    %52 = vector.load %arg2[%c12, %c0_12] : memref<72x64xf32, #tpu.memory_space<vmem>>, vector<1x64xf32>
    %c3_i32 = arith.constant 3 : i32
    %53 = tpu.dynamic_rotate %28 by %c3_i32 dim 0 : vector<16x64xf32>, i32 -> vector<16x64xf32>
    %c3_i32_13 = arith.constant 3 : i32
    %54 = vector.broadcast %c3_i32_13 : i32 to vector<16x64xi32>
    %55 = arith.cmpi sge, %30, %54 : vector<16x64xi32>
    %56 = vector.broadcast %52 : vector<1x64xf32> to vector<16x64xf32>
    %57 = arith.mulf %53, %56 : vector<16x64xf32>
    %cst_14 = arith.constant 0.000000e+00 : f32
    %58 = vector.broadcast %cst_14 : f32 to vector<16x64xf32>
    %59 = arith.select %55, %57, %58 : vector<16x64xi1>, vector<16x64xf32>
    %60 = arith.addf %51, %59 : vector<16x64xf32>
    %c11 = arith.constant 11 : index
    %c0_15 = arith.constant 0 : index
    %61 = vector.load %arg2[%c11, %c0_15] : memref<72x64xf32, #tpu.memory_space<vmem>>, vector<1x64xf32>
    %c4_i32 = arith.constant 4 : i32
    %62 = tpu.dynamic_rotate %28 by %c4_i32 dim 0 : vector<16x64xf32>, i32 -> vector<16x64xf32>
    %c4_i32_16 = arith.constant 4 : i32
    %63 = vector.broadcast %c4_i32_16 : i32 to vector<16x64xi32>
    %64 = arith.cmpi sge, %30, %63 : vector<16x64xi32>
    %65 = vector.broadcast %61 : vector<1x64xf32> to vector<16x64xf32>
    %66 = arith.mulf %62, %65 : vector<16x64xf32>
    %cst_17 = arith.constant 0.000000e+00 : f32
    %67 = vector.broadcast %cst_17 : f32 to vector<16x64xf32>
    %68 = arith.select %64, %66, %67 : vector<16x64xi1>, vector<16x64xf32>
    %69 = arith.addf %60, %68 : vector<16x64xf32>
    %c10 = arith.constant 10 : index
    %c0_18 = arith.constant 0 : index
    %70 = vector.load %arg2[%c10, %c0_18] : memref<72x64xf32, #tpu.memory_space<vmem>>, vector<1x64xf32>
    %c5_i32 = arith.constant 5 : i32
    %71 = tpu.dynamic_rotate %28 by %c5_i32 dim 0 : vector<16x64xf32>, i32 -> vector<16x64xf32>
    %c5_i32_19 = arith.constant 5 : i32
    %72 = vector.broadcast %c5_i32_19 : i32 to vector<16x64xi32>
    %73 = arith.cmpi sge, %30, %72 : vector<16x64xi32>
    %74 = vector.broadcast %70 : vector<1x64xf32> to vector<16x64xf32>
    %75 = arith.mulf %71, %74 : vector<16x64xf32>
    %cst_20 = arith.constant 0.000000e+00 : f32
    %76 = vector.broadcast %cst_20 : f32 to vector<16x64xf32>
    %77 = arith.select %73, %75, %76 : vector<16x64xi1>, vector<16x64xf32>
    %78 = arith.addf %69, %77 : vector<16x64xf32>
    %c9 = arith.constant 9 : index
    %c0_21 = arith.constant 0 : index
    %79 = vector.load %arg2[%c9, %c0_21] : memref<72x64xf32, #tpu.memory_space<vmem>>, vector<1x64xf32>
    %c6_i32 = arith.constant 6 : i32
    %80 = tpu.dynamic_rotate %28 by %c6_i32 dim 0 : vector<16x64xf32>, i32 -> vector<16x64xf32>
    %c6_i32_22 = arith.constant 6 : i32
    %81 = vector.broadcast %c6_i32_22 : i32 to vector<16x64xi32>
    %82 = arith.cmpi sge, %30, %81 : vector<16x64xi32>
    %83 = vector.broadcast %79 : vector<1x64xf32> to vector<16x64xf32>
    %84 = arith.mulf %80, %83 : vector<16x64xf32>
    %cst_23 = arith.constant 0.000000e+00 : f32
    %85 = vector.broadcast %cst_23 : f32 to vector<16x64xf32>
    %86 = arith.select %82, %84, %85 : vector<16x64xi1>, vector<16x64xf32>
    %87 = arith.addf %78, %86 : vector<16x64xf32>
    %c8 = arith.constant 8 : index
    %c0_24 = arith.constant 0 : index
    %88 = vector.load %arg2[%c8, %c0_24] : memref<72x64xf32, #tpu.memory_space<vmem>>, vector<1x64xf32>
    %c7_i32 = arith.constant 7 : i32
    %89 = tpu.dynamic_rotate %28 by %c7_i32 dim 0 : vector<16x64xf32>, i32 -> vector<16x64xf32>
    %c7_i32_25 = arith.constant 7 : i32
    %90 = vector.broadcast %c7_i32_25 : i32 to vector<16x64xi32>
    %91 = arith.cmpi sge, %30, %90 : vector<16x64xi32>
    %92 = vector.broadcast %88 : vector<1x64xf32> to vector<16x64xf32>
    %93 = arith.mulf %89, %92 : vector<16x64xf32>
    %cst_26 = arith.constant 0.000000e+00 : f32
    %94 = vector.broadcast %cst_26 : f32 to vector<16x64xf32>
    %95 = arith.select %91, %93, %94 : vector<16x64xi1>, vector<16x64xf32>
    %96 = arith.addf %87, %95 : vector<16x64xf32>
    %c48 = arith.constant 48 : index
    %c0_27 = arith.constant 0 : index
    %97 = vector.load %arg2[%c48, %c0_27] : memref<72x64xf32, #tpu.memory_space<vmem>>, vector<1x64xf32>
    %98 = vector.broadcast %97 : vector<1x64xf32> to vector<16x64xf32>
    %99 = arith.addf %96, %98 : vector<16x64xf32>
    %100 = arith.negf %99 : vector<16x64xf32>
    %101 = math.exp %100 : vector<16x64xf32>
    %cst_28 = arith.constant 1.000000e+00 : f32
    %102 = vector.broadcast %cst_28 : f32 to vector<16x64xf32>
    %103 = arith.addf %102, %101 : vector<16x64xf32>
    %104 = arith.divf %102, %103 : vector<16x64xf32>
    %105 = arith.mulf %99, %104 : vector<16x64xf32>
    %c8_29 = arith.constant 8 : index
    %c0_30 = arith.constant 0 : index
    %106 = vector.load %arg3[%c8_29, %c0_30] : memref<144x128xf32, #tpu.memory_space<vmem>>, vector<64x128xf32>
    %cst_31 = arith.constant dense<0.000000e+00> : vector<16x128xf32>
    %107 = tpu.matmul %105, %106, %cst_31 {dimension_numbers = #tpu.dot_dimension_numbers<[1], [0], [0], [1], [0, 0, 1, 1], [], []>} : vector<16x64xf32>, vector<64x128xf32>, vector<16x128xf32> -> vector<16x128xf32>
    %108 = vector.extract_strided_slice %107 {offsets = [0, 0], sizes = [16, 32], strides = [1, 1]} : vector<16x128xf32> to vector<16x32xf32>
    %109 = vector.extract_strided_slice %107 {offsets = [0, 64], sizes = [16, 64], strides = [1, 1]} : vector<16x128xf32> to vector<16x64xf32>
    %c56 = arith.constant 56 : index
    %c0_32 = arith.constant 0 : index
    %110 = vector.load %arg2[%c56, %c0_32] : memref<72x64xf32, #tpu.memory_space<vmem>>, vector<1x64xf32>
    %111 = vector.broadcast %110 : vector<1x64xf32> to vector<16x64xf32>
    %112 = arith.addf %109, %111 : vector<16x64xf32>
    %cst_33 = arith.constant 2.000000e+01 : f32
    %113 = vector.broadcast %cst_33 : f32 to vector<16x64xf32>
    %114 = arith.cmpf ogt, %112, %113 : vector<16x64xf32>
    %115 = math.exp %112 : vector<16x64xf32>
    %116 = math.log1p %115 : vector<16x64xf32>
    %117 = arith.select %114, %112, %116 : vector<16x64xi1>, vector<16x64xf32>
    %118 = arith.mulf %117, %105 : vector<16x64xf32>
    %c16 = arith.constant 16 : index
    %c0_34 = arith.constant 0 : index
    %119 = vector.load %arg2[%c16, %c0_34] : memref<72x64xf32, #tpu.memory_space<vmem>>, vector<32x64xf32>
    %120 = vector.shape_cast %117 : vector<16x64xf32> to vector<2x8x64xf32>
    %121 = vector.shape_cast %120 : vector<2x8x64xf32> to vector<2x8x1x64xf32>
    %122 = vector.shape_cast %119 : vector<32x64xf32> to vector<1x1x32x64xf32>
    %123 = vector.broadcast %121 : vector<2x8x1x64xf32> to vector<2x8x32x64xf32>
    %124 = vector.broadcast %122 : vector<1x1x32x64xf32> to vector<2x8x32x64xf32>
    %125 = arith.mulf %123, %124 : vector<2x8x32x64xf32>
    %126 = math.exp %125 : vector<2x8x32x64xf32>
    %127 = vector.shape_cast %108 : vector<16x32xf32> to vector<2x8x32xf32>
    %128 = vector.shape_cast %127 : vector<2x8x32xf32> to vector<2x8x32x1xf32>
    %129 = vector.shape_cast %118 : vector<16x64xf32> to vector<2x8x64xf32>
    %130 = vector.shape_cast %129 : vector<2x8x64xf32> to vector<2x8x1x64xf32>
    %131 = vector.broadcast %128 : vector<2x8x32x1xf32> to vector<2x8x32x64xf32>
    %132 = vector.broadcast %130 : vector<2x8x1x64xf32> to vector<2x8x32x64xf32>
    %133 = arith.mulf %131, %132 : vector<2x8x32x64xf32>
    %134 = vector.extract_strided_slice %133 {offsets = [0, 0, 0, 0], sizes = [2, 1, 32, 64], strides = [1, 1, 1, 1]} : vector<2x8x32x64xf32> to vector<2x1x32x64xf32>
    %135 = vector.shape_cast %134 : vector<2x1x32x64xf32> to vector<2x32x64xf32>
    %136 = vector.extract_strided_slice %126 {offsets = [0, 1, 0, 0], sizes = [2, 1, 32, 64], strides = [1, 1, 1, 1]} : vector<2x8x32x64xf32> to vector<2x1x32x64xf32>
    %137 = vector.shape_cast %136 : vector<2x1x32x64xf32> to vector<2x32x64xf32>
    %138 = arith.mulf %137, %135 : vector<2x32x64xf32>
    %139 = vector.extract_strided_slice %133 {offsets = [0, 1, 0, 0], sizes = [2, 1, 32, 64], strides = [1, 1, 1, 1]} : vector<2x8x32x64xf32> to vector<2x1x32x64xf32>
    %140 = vector.shape_cast %139 : vector<2x1x32x64xf32> to vector<2x32x64xf32>
    %141 = arith.addf %138, %140 : vector<2x32x64xf32>
    %142 = vector.extract_strided_slice %126 {offsets = [0, 2, 0, 0], sizes = [2, 1, 32, 64], strides = [1, 1, 1, 1]} : vector<2x8x32x64xf32> to vector<2x1x32x64xf32>
    %143 = vector.shape_cast %142 : vector<2x1x32x64xf32> to vector<2x32x64xf32>
    %144 = arith.mulf %143, %141 : vector<2x32x64xf32>
    %145 = vector.extract_strided_slice %133 {offsets = [0, 2, 0, 0], sizes = [2, 1, 32, 64], strides = [1, 1, 1, 1]} : vector<2x8x32x64xf32> to vector<2x1x32x64xf32>
    %146 = vector.shape_cast %145 : vector<2x1x32x64xf32> to vector<2x32x64xf32>
    %147 = arith.addf %144, %146 : vector<2x32x64xf32>
    %148 = vector.extract_strided_slice %126 {offsets = [0, 3, 0, 0], sizes = [2, 1, 32, 64], strides = [1, 1, 1, 1]} : vector<2x8x32x64xf32> to vector<2x1x32x64xf32>
    %149 = vector.shape_cast %148 : vector<2x1x32x64xf32> to vector<2x32x64xf32>
    %150 = arith.mulf %149, %147 : vector<2x32x64xf32>
    %151 = vector.extract_strided_slice %133 {offsets = [0, 3, 0, 0], sizes = [2, 1, 32, 64], strides = [1, 1, 1, 1]} : vector<2x8x32x64xf32> to vector<2x1x32x64xf32>
    %152 = vector.shape_cast %151 : vector<2x1x32x64xf32> to vector<2x32x64xf32>
    %153 = arith.addf %150, %152 : vector<2x32x64xf32>
    %154 = vector.extract_strided_slice %126 {offsets = [0, 4, 0, 0], sizes = [2, 1, 32, 64], strides = [1, 1, 1, 1]} : vector<2x8x32x64xf32> to vector<2x1x32x64xf32>
    %155 = vector.shape_cast %154 : vector<2x1x32x64xf32> to vector<2x32x64xf32>
    %156 = arith.mulf %155, %153 : vector<2x32x64xf32>
    %157 = vector.extract_strided_slice %133 {offsets = [0, 4, 0, 0], sizes = [2, 1, 32, 64], strides = [1, 1, 1, 1]} : vector<2x8x32x64xf32> to vector<2x1x32x64xf32>
    %158 = vector.shape_cast %157 : vector<2x1x32x64xf32> to vector<2x32x64xf32>
    %159 = arith.addf %156, %158 : vector<2x32x64xf32>
    %160 = vector.extract_strided_slice %126 {offsets = [0, 5, 0, 0], sizes = [2, 1, 32, 64], strides = [1, 1, 1, 1]} : vector<2x8x32x64xf32> to vector<2x1x32x64xf32>
    %161 = vector.shape_cast %160 : vector<2x1x32x64xf32> to vector<2x32x64xf32>
    %162 = arith.mulf %161, %159 : vector<2x32x64xf32>
    %163 = vector.extract_strided_slice %133 {offsets = [0, 5, 0, 0], sizes = [2, 1, 32, 64], strides = [1, 1, 1, 1]} : vector<2x8x32x64xf32> to vector<2x1x32x64xf32>
    %164 = vector.shape_cast %163 : vector<2x1x32x64xf32> to vector<2x32x64xf32>
    %165 = arith.addf %162, %164 : vector<2x32x64xf32>
    %166 = vector.extract_strided_slice %126 {offsets = [0, 6, 0, 0], sizes = [2, 1, 32, 64], strides = [1, 1, 1, 1]} : vector<2x8x32x64xf32> to vector<2x1x32x64xf32>
    %167 = vector.shape_cast %166 : vector<2x1x32x64xf32> to vector<2x32x64xf32>
    %168 = arith.mulf %167, %165 : vector<2x32x64xf32>
    %169 = vector.extract_strided_slice %133 {offsets = [0, 6, 0, 0], sizes = [2, 1, 32, 64], strides = [1, 1, 1, 1]} : vector<2x8x32x64xf32> to vector<2x1x32x64xf32>
    %170 = vector.shape_cast %169 : vector<2x1x32x64xf32> to vector<2x32x64xf32>
    %171 = arith.addf %168, %170 : vector<2x32x64xf32>
    %172 = vector.extract_strided_slice %126 {offsets = [0, 7, 0, 0], sizes = [2, 1, 32, 64], strides = [1, 1, 1, 1]} : vector<2x8x32x64xf32> to vector<2x1x32x64xf32>
    %173 = vector.shape_cast %172 : vector<2x1x32x64xf32> to vector<2x32x64xf32>
    %174 = arith.mulf %173, %171 : vector<2x32x64xf32>
    %175 = vector.extract_strided_slice %133 {offsets = [0, 7, 0, 0], sizes = [2, 1, 32, 64], strides = [1, 1, 1, 1]} : vector<2x8x32x64xf32> to vector<2x1x32x64xf32>
    %176 = vector.shape_cast %175 : vector<2x1x32x64xf32> to vector<2x32x64xf32>
    %177 = arith.addf %174, %176 : vector<2x32x64xf32>
    %178 = vector.extract_strided_slice %107 {offsets = [7, 0], sizes = [1, 128], strides = [1, 1]} : vector<16x128xf32> to vector<1x128xf32>
    %179 = vector.extract_strided_slice %107 {offsets = [15, 0], sizes = [1, 128], strides = [1, 1]} : vector<16x128xf32> to vector<1x128xf32>
    %180 = tpu.concatenate %178, %179 in 0 : vector<1x128xf32>, vector<1x128xf32> -> vector<2x128xf32>
    %181 = vector.extract_strided_slice %180 {offsets = [0, 32], sizes = [2, 32], strides = [1, 1]} : vector<2x128xf32> to vector<2x32xf32>
    %182 = vector.shape_cast %181 : vector<2x32xf32> to vector<2x32x1xf32>
    %183 = vector.broadcast %182 : vector<2x32x1xf32> to vector<2x32x64xf32>
    %184 = arith.mulf %177, %183 : vector<2x32x64xf32>
    %cst_35 = arith.constant dense<0.000000e+00> : vector<2x64xf32>
    %185 = vector.multi_reduction <add>, %184, %cst_35 [1] : vector<2x32x64xf32> to vector<2x64xf32>
    %c64 = arith.constant 64 : index
    %c0_36 = arith.constant 0 : index
    %186 = vector.load %arg2[%c64, %c0_36] : memref<72x64xf32, #tpu.memory_space<vmem>>, vector<1x64xf32>
    %187 = vector.extract_strided_slice %105 {offsets = [7, 0], sizes = [1, 64], strides = [1, 1]} : vector<16x64xf32> to vector<1x64xf32>
    %188 = vector.extract_strided_slice %105 {offsets = [15, 0], sizes = [1, 64], strides = [1, 1]} : vector<16x64xf32> to vector<1x64xf32>
    %189 = tpu.concatenate %187, %188 in 0 : vector<1x64xf32>, vector<1x64xf32> -> vector<2x64xf32>
    %190 = vector.broadcast %186 : vector<1x64xf32> to vector<2x64xf32>
    %191 = arith.mulf %190, %189 : vector<2x64xf32>
    %192 = arith.addf %185, %191 : vector<2x64xf32>
    %193 = vector.extract_strided_slice %27 {offsets = [7, 0], sizes = [1, 128], strides = [1, 1]} : vector<16x128xf32> to vector<1x128xf32>
    %194 = vector.extract_strided_slice %27 {offsets = [15, 0], sizes = [1, 128], strides = [1, 1]} : vector<16x128xf32> to vector<1x128xf32>
    %195 = tpu.concatenate %193, %194 in 0 : vector<1x128xf32>, vector<1x128xf32> -> vector<2x128xf32>
    %196 = vector.extract_strided_slice %195 {offsets = [0, 64], sizes = [2, 64], strides = [1, 1]} : vector<2x128xf32> to vector<2x64xf32>
    %197 = arith.negf %196 : vector<2x64xf32>
    %198 = math.exp %197 : vector<2x64xf32>
    %cst_37 = arith.constant 1.000000e+00 : f32
    %199 = vector.broadcast %cst_37 : f32 to vector<2x64xf32>
    %200 = arith.addf %199, %198 : vector<2x64xf32>
    %201 = arith.divf %199, %200 : vector<2x64xf32>
    %202 = arith.mulf %196, %201 : vector<2x64xf32>
    %203 = arith.mulf %192, %202 : vector<2x64xf32>
    %c72 = arith.constant 72 : index
    %c0_38 = arith.constant 0 : index
    %204 = vector.load %arg3[%c72, %c0_38] : memref<144x128xf32, #tpu.memory_space<vmem>>, vector<64x128xf32>
    %cst_39 = arith.constant dense<0.000000e+00> : vector<2x128xf32>
    %205 = tpu.matmul %203, %204, %cst_39 {dimension_numbers = #tpu.dot_dimension_numbers<[1], [0], [0], [1], [0, 0, 1, 1], [], []>} : vector<2x64xf32>, vector<64x128xf32>, vector<2x128xf32> -> vector<2x128xf32>
    %c136 = arith.constant 136 : index
    %c0_40 = arith.constant 0 : index
    %206 = vector.load %arg3[%c136, %c0_40] : memref<144x128xf32, #tpu.memory_space<vmem>>, vector<1x128xf32>
    %207 = vector.broadcast %206 : vector<1x128xf32> to vector<2x128xf32>
    %208 = arith.addf %205, %207 : vector<2x128xf32>
    %209 = vector.extract_strided_slice %208 {offsets = [0, 0], sizes = [2, 2], strides = [1, 1]} : vector<2x128xf32> to vector<2x2xf32>
    %c0_41 = arith.constant 0 : index
    %c0_42 = arith.constant 0 : index
    %210 = vector.load %arg4[%c0_41, %c0_42] : memref<2x2xf32, #tpu.memory_space<vmem>>, vector<2x2xf32>
    tpu.vector_store %arg4[%c0_41, %c0_42], %209 {strides = array<i32>} : memref<2x2xf32, #tpu.memory_space<vmem>>, vector<2x2xf32>,
    return
  }
  func.func @transform_0(%arg0: i32) -> (i32, i32, i32) {
    %c0_i32 = arith.constant 0 : i32
    %c0_i32_0 = arith.constant 0 : i32
    %c0_i32_1 = arith.constant 0 : i32
    %c0_i32_2 = arith.constant 0 : i32
    return %c0_i32, %c0_i32_0, %c0_i32_1 : i32, i32, i32
  }
  func.func @transform_1(%arg0: i32) -> (i32, i32) {
    %c0_i32 = arith.constant 0 : i32
    %c0_i32_0 = arith.constant 0 : i32
    %c0_i32_1 = arith.constant 0 : i32
    return %c0_i32, %c0_i32_0 : i32, i32
  }
  func.func @transform_2(%arg0: i32) -> (i32, i32) {
    %c0_i32 = arith.constant 0 : i32
    %c0_i32_0 = arith.constant 0 : i32
    %c0_i32_1 = arith.constant 0 : i32
    return %c0_i32, %c0_i32_0 : i32, i32
  }
  func.func @transform_3(%arg0: i32) -> (i32, i32) {
    %c0_i32 = arith.constant 0 : i32
    %c0_i32_0 = arith.constant 0 : i32
    %c0_i32_1 = arith.constant 0 : i32
    return %c0_i32, %c0_i32_0 : i32, i32
  }
}

</mosaic_0001>

<llo_original>
// kernel: tpu_custom_call.1
$region0: #{tpu_custom_call.1}
  #allocation0 [shape = 'u32[]', space=smem, size = 0x4, offset = 0x4, fixed_abs, tag = 'smem constant byte address 0x4 - core index']
  #allocation1 [shape = 'u32[144,128]{1,0:T(1,128)}', space=vmem, size = 0x12000, scoped, tag = 'internal scratch']
  %s0 = inlined_call_operand.vmem [shape: f32[2,8,2], index: 0, kind: input, shape index: {}]
  %s1 = inlined_call_operand.vmem [shape: f32[72,64], index: 1, kind: input, shape index: {}]
  %s2 = inlined_call_operand.vmem [shape: f32[144,128], index: 2, kind: input, shape index: {}]
  %s3 = inlined_call_operand.hbm [shape: f32[2,2], index: 3, kind: output, shape index: {}]
  %s4 = sld [smem:[#allocation0]]
  $region22: #{tpu_custom_call.1} parent=0
    _
  %s6 = ssub.s32 1, %s4
  %s7 = scalar_select 0, %s6, %s4
  $region1: #{tpu_custom_call.1} parent=0
    #allocation2 [shape = 'u8[1024]{0}', space=vmem, size = 0x400, scoped, tag = 'output window, operand 0, single buffered']
    #allocation3 [shape = 's32[1]{0}', space=sflag, size = 0x4, scoped, tag = 'scoped memory for tpu_custom_call.1']
    %8 = vsyncpa [#allocation3], 0
    // Predicated region
    $region2: #{tpu_custom_call.1} parent=1 // pred_check
      _
    $region3: #{tpu_custom_call.1} parent=1 // pred_check_branch
      %10 = sbr.rel (0) target = $region5
    $region4: #{tpu_custom_call.1} parent=1 // pred_region
      _
    $region5: #{tpu_custom_call.1} parent=1 // pred_fallthru
      _
    // Predicated region
    $region6: #{tpu_custom_call.1} parent=1 // pred_check
      _
    $region7: #{tpu_custom_call.1} parent=1 // pred_check_branch
      %12 = sbr.rel (0) target = $region9
    $region8: #{tpu_custom_call.1} parent=1 // pred_region
      _
    $region9: #{tpu_custom_call.1} parent=1 // pred_fallthru
      _
    // Predicated region
    $region10: #{tpu_custom_call.1} parent=1 // pred_check
      _
    $region11: #{tpu_custom_call.1} parent=1 // pred_check_branch
      %14 = sbr.rel (0) target = $region13
    $region12: #{tpu_custom_call.1} parent=1 // pred_region
      _
    $region13: #{tpu_custom_call.1} parent=1 // pred_fallthru
      _
    %v15 = vld [vmem:[%s0] sm:$0xff]
    %v16 = vld [vmem:[%s0 + $0x8] sm:$0xff]
    %v17 = vmul.f32 %v15, %v15
    %v18 = vmul.f32 %v16, %v16
    %21 = vrot.lane.b32.xlu0 %v17, 127
    %v22 = vpop.permute.xlu0 %21
    %23 = vrot.lane.b32.xlu0 %v18, 127
    %v24 = vpop.permute.xlu0 %23
    %v27 = vadd.f32 %v17, %v22
    %v28 = vadd.f32 %v18, %v24
    %v29 = vmul.f32 %v27, 0.5
    %v30 = vmul.f32 %v28, 0.5
    %v31 = vadd.f32 %v29, 1e-05
    %v32 = vadd.f32 %v30, 1e-05
    %v33 = vrsqrt.pop %v31
    %v34 = vrsqrt.pop %v32
    %v35 = vld [vmem:[%s2] sm:$0x3]
    %v36 = vmul.f32 %v15, %v33
    %v37 = vmul.f32 %v16, %v34
    %39 = vset.pattern.permute.xlu0 0
    %40 = vperm.xlu0 %39, %v36
    %v41 = vpop.permute.xlu0 %40
    %44 = vset.pattern.permute.xlu0 0
    %45 = vperm.xlu0 %44, %v37
    %v46 = vpop.permute.xlu0 %45
    %v48 = vlaneseq
    %v49 = vshrl.u32 %v48, 7
    %v50 = vsub.s32 0, %v49
    %v51 = vrot.slane %v35, %v50
    %v52 = vmul.f32 %v41, %v51
    %v53 = vmul.f32 %v46, %v51
    %56 = vrot.lane.b32.xlu0 %v33, 1
    %v57 = vpop.permute.xlu0 %56
    %58 = vrot.lane.b32.xlu0 %v34, 1
    %v59 = vpop.permute.xlu0 %58
    %v62 = vmul.f32 %v15, %v57
    %v63 = vmul.f32 %v16, %v59
    %65 = vset.pattern.permute.xlu0 1
    %66 = vperm.xlu0 %65, %v62
    %v67 = vpop.permute.xlu0 %66
    %70 = vset.pattern.permute.xlu0 1
    %71 = vperm.xlu0 %70, %v63
    %v72 = vpop.permute.xlu0 %71
    %v74 = vlaneseq
    %v75 = vshrl.u32 %v74, 7
    %v76 = vsub.s32 1, %v75
    %v77 = vrot.slane %v35, %v76
    %v78 = vmul.f32 %v67, %v77
    %v79 = vmul.f32 %v72, %v77
    %v80 = vadd.f32 %v52, %v78
    %v81 = vadd.f32 %v53, %v79
    %v82 = vlaneseq
    %v83 = vshrl.u32 %v82, 7
    %v84 = vld [vmem:[%s1 + $0xf] sm:$0x1]
    %v85 = vlaneseq
    %v86 = vshrl.u32 %v85, 7
    %v87 = vsub.s32 0, %v86
    %v88 = vrot.slane %v84, %v87
    %v89 = vmul.f32 %v80, %v88
    %v90 = vmul.f32 %v81, %v88
    %v91 = vld [vmem:[%s1 + $0xe] sm:$0x1]
    %v92 = vrot.slane %v80, 7
    %v93 = vrot.slane %v81, 7
    %vm94 = vcmp.lt.s32.totalorder %v83, 1
    %v95 = vsel %vm94, %v92, %v93
    %v96 = vsel %vm94, %v93, %v92
    %vm97 = vcmp.ge.s32.totalorder %v83, 1
    %v98 = vlaneseq
    %v99 = vshrl.u32 %v98, 7
    %v100 = vsub.s32 0, %v99
    %v101 = vrot.slane %v91, %v100
    %v102 = vmul.f32 %v96, %v101
    %v103 = vmul.f32 %v95, %v101
    %v104 = vsel %vm97, %v102, 0.0
    %v105 = vsel %vm97, %v103, 0.0
    %v106 = vadd.f32 %v89, %v104
    %v107 = vadd.f32 %v90, %v105
    %v108 = vld [vmem:[%s1 + $0xd] sm:$0x1]
    %v109 = vrot.slane %v80, 6
    %v110 = vrot.slane %v81, 6
    %vm111 = vcmp.lt.s32.totalorder %v83, 2
    %v112 = vsel %vm111, %v109, %v110
    %v113 = vsel %vm111, %v110, %v109
    %vm114 = vcmp.ge.s32.totalorder %v83, 2
    %v115 = vlaneseq
    %v116 = vshrl.u32 %v115, 7
    %v117 = vsub.s32 0, %v116
    %v118 = vrot.slane %v108, %v117
    %v119 = vmul.f32 %v113, %v118
    %v120 = vmul.f32 %v112, %v118
    %v121 = vsel %vm114, %v119, 0.0
    %v122 = vsel %vm114, %v120, 0.0
    %v123 = vadd.f32 %v106, %v121
    %v124 = vadd.f32 %v107, %v122
    %v125 = vld [vmem:[%s1 + $0xc] sm:$0x1]
    %v126 = vrot.slane %v80, 5
    %v127 = vrot.slane %v81, 5
    %vm128 = vcmp.lt.s32.totalorder %v83, 3
    %v129 = vsel %vm128, %v126, %v127
    %v130 = vsel %vm128, %v127, %v126
    %vm131 = vcmp.ge.s32.totalorder %v83, 3
    %v132 = vlaneseq
    %v133 = vshrl.u32 %v132, 7
    %v134 = vsub.s32 0, %v133
    %v135 = vrot.slane %v125, %v134
    %v136 = vmul.f32 %v130, %v135
    %v137 = vmul.f32 %v129, %v135
    %v138 = vsel %vm131, %v136, 0.0
    %v139 = vsel %vm131, %v137, 0.0
    %v140 = vadd.f32 %v123, %v138
    %v141 = vadd.f32 %v124, %v139
    %v142 = vld [vmem:[%s1 + $0xb] sm:$0x1]
    %v143 = vrot.slane %v80, 4
    %v144 = vrot.slane %v81, 4
    %vm145 = vcmp.lt.s32.totalorder %v83, 4
    %v146 = vsel %vm145, %v143, %v144
    %v147 = vsel %vm145, %v144, %v143
    %vm148 = vcmp.ge.s32.totalorder %v83, 4
    %v149 = vlaneseq
    %v150 = vshrl.u32 %v149, 7
    %v151 = vsub.s32 0, %v150
    %v152 = vrot.slane %v142, %v151
    %v153 = vmul.f32 %v147, %v152
    %v154 = vmul.f32 %v146, %v152
    %v155 = vsel %vm148, %v153, 0.0
    %v156 = vsel %vm148, %v154, 0.0
    %v157 = vadd.f32 %v140, %v155
    %v158 = vadd.f32 %v141, %v156
    %v159 = vld [vmem:[%s1 + $0xa] sm:$0x1]
    %v160 = vrot.slane %v80, 3
    %v161 = vrot.slane %v81, 3
    %vm162 = vcmp.lt.s32.totalorder %v83, 5
    %v163 = vsel %vm162, %v160, %v161
    %v164 = vsel %vm162, %v161, %v160
    %vm165 = vcmp.ge.s32.totalorder %v83, 5
    %v166 = vlaneseq
    %v167 = vshrl.u32 %v166, 7
    %v168 = vsub.s32 0, %v167
    %v169 = vrot.slane %v159, %v168
    %v170 = vmul.f32 %v164, %v169
    %v171 = vmul.f32 %v163, %v169
    %v172 = vsel %vm165, %v170, 0.0
    %v173 = vsel %vm165, %v171, 0.0
    %v174 = vadd.f32 %v157, %v172
    %v175 = vadd.f32 %v158, %v173
    %v176 = vld [vmem:[%s1 + $0x9] sm:$0x1]
    %v177 = vrot.slane %v80, 2
    %v178 = vrot.slane %v81, 2
    %vm179 = vcmp.lt.s32.totalorder %v83, 6
    %v180 = vsel %vm179, %v177, %v178
    %v181 = vsel %vm179, %v178, %v177
    %vm182 = vcmp.ge.s32.totalorder %v83, 6
    %v183 = vlaneseq
    %v184 = vshrl.u32 %v183, 7
    %v185 = vsub.s32 0, %v184
    %v186 = vrot.slane %v176, %v185
    %v187 = vmul.f32 %v181, %v186
    %v188 = vmul.f32 %v180, %v186
    %v189 = vsel %vm182, %v187, 0.0
    %v190 = vsel %vm182, %v188, 0.0
    %v191 = vadd.f32 %v174, %v189
    %v192 = vadd.f32 %v175, %v190
    %v193 = vld [vmem:[%s1 + $0x8] sm:$0x1]
    %v194 = vrot.slane %v80, 1
    %v195 = vrot.slane %v81, 1
    %vm196 = vcmp.lt.s32.totalorder %v83, 7
    %v197 = vsel %vm196, %v194, %v195
    %v198 = vsel %vm196, %v195, %v194
    %vm199 = vcmp.ge.s32.totalorder %v83, 7
    %v200 = vlaneseq
    %v201 = vshrl.u32 %v200, 7
    %v202 = vsub.s32 0, %v201
    %v203 = vrot.slane %v193, %v202
    %v204 = vmul.f32 %v198, %v203
    %v205 = vmul.f32 %v197, %v203
    %v206 = vsel %vm199, %v204, 0.0
    %v207 = vsel %vm199, %v205, 0.0
    %v208 = vadd.f32 %v191, %v206
    %v209 = vadd.f32 %v192, %v207
    %v210 = vld [vmem:[%s1 + $0x30] sm:$0x1]
    %v211 = vlaneseq
    %v212 = vshrl.u32 %v211, 7
    %v213 = vsub.s32 0, %v212
    %v214 = vrot.slane %v210, %v213
    %v215 = vadd.f32 %v208, %v214
    %v216 = vadd.f32 %v209, %v214
    %v217 = vxor.u32 %v215, 2147483648
    %v218 = vxor.u32 %v216, 2147483648
    %v219 = vmul.f32 %v217, 1.442695
    %v220 = vpow.pop %v219
    %v221 = vmul.f32 %v218, 1.442695
    %v222 = vpow.pop %v221
    %v223 = vadd.f32 %v220, 1.0
    %v224 = vadd.f32 %v222, 1.0
    %v225 = vrcp.pop %v223
    %v226 = vmul.f32 1.0, %v225
    %v227 = vrcp.pop %v224
    %v228 = vmul.f32 1.0, %v227
    %v229 = vmul.f32 %v215, %v226
    %v230 = vmul.f32 %v216, %v228
    %v231 = vld [vmem:[%s2 + $0x8] sm:$0xff]
    %v232 = vld [vmem:[%s2 + $0x10] sm:$0xff]
    %v233 = vld [vmem:[%s2 + $0x18] sm:$0xff]
    %v234 = vld [vmem:[%s2 + $0x20] sm:$0xff]
    %v235 = vld [vmem:[%s2 + $0x28] sm:$0xff]
    %v236 = vld [vmem:[%s2 + $0x30] sm:$0xff]
    %v237 = vld [vmem:[%s2 + $0x38] sm:$0xff]
    %v238 = vld [vmem:[%s2 + $0x40] sm:$0xff]
    %vm239 = vcmask 523264
    %v241 = vsel %vm239, %v229, 0
    %v244 = vsel %vm239, %v230, 0
    %246 = vmatprep.subr.mxu0 0.0
    %247 = vmatpush1.msra.mxu0 %v231
    %248 = vmatprep.subr.mxu0 0.0
    %249 = vmatpush1.msra.mxu0 %v232
    %250 = vmatprep.subr.mxu0 0.0
    %251 = vmatpush1.msra.mxu0 %v233
    %252 = vmatprep.subr.mxu0 0.0
    %253 = vmatpush1.msra.mxu0 %v234
    %254 = vmatprep.subr.mxu0 0.0
    %255 = vmatpush1.msra.mxu0 %v235
    %256 = vmatprep.subr.mxu0 0.0
    %257 = vmatpush1.msra.mxu0 %v236
    %258 = vmatprep.subr.mxu0 0.0
    %259 = vmatpush1.msra.mxu0 %v237
    %260 = vmatprep.subr.mxu0 0.0
    %261 = vmatpush1.msra.mxu0 %v238
    %262 = vmatprep.subr.mxu0 0.0
    %263 = vmatpush1.msra.mxu0 0.0
    %264 = vmatprep.subr.mxu0 0.0
    %265 = vmatpush1.msra.mxu0 0.0
    %266 = vmatprep.subr.mxu0 0.0
    %267 = vmatpush1.msra.mxu0 0.0
    %268 = vmatprep.subr.mxu0 0.0
    %269 = vmatpush1.msra.mxu0 0.0
    %270 = vmatprep.subr.mxu0 0.0
    %271 = vmatpush1.msra.mxu0 0.0
    %272 = vmatprep.subr.mxu0 0.0
    %273 = vmatpush1.msra.mxu0 0.0
    %274 = vmatprep.subr.mxu0 0.0
    %275 = vmatpush1.msra.mxu0 0.0
    %276 = vmatprep.subr.mxu0 0.0
    %277 = vmatpush1.msra.mxu0 0.0
    %278 = vmatprep.subr.mxu0 0.0
    %279 = vmatpush1.msra.mxu0 0.0
    %280 = vmatprep.subr.mxu0 0.0
    %281 = vmatpush1.msra.mxu0 0.0
    %282 = vmatprep.subr.mxu0 0.0
    %283 = vmatpush1.msra.mxu0 0.0
    %284 = vmatprep.subr.mxu0 0.0
    %285 = vmatpush1.msra.mxu0 0.0
    %286 = vmatprep.subr.mxu0 0.0
    %287 = vmatpush1.msra.mxu0 0.0
    %288 = vmatprep.subr.mxu0 0.0
    %289 = vmatpush1.msra.mxu0 0.0
    %290 = vmatprep.subr.mxu0 0.0
    %291 = vmatpush1.msra.mxu0 0.0
    %292 = vmatprep.subr.mxu0 0.0
    %293 = vmatpush1.msra.mxu0 0.0
    %294 = vmatprep.subr.mxu0 0.0
    %295 = vmatpush1.msra.mxu0 0.0
    %296 = vmatprep.subr.mxu0 0.0
    %297 = vmatpush1.msra.mxu0 0.0
    %298 = vmatprep.subr.mxu0 0.0
    %299 = vmatpush1.msra.mxu0 0.0
    %300 = vmatprep.subr.mxu0 0.0
    %301 = vmatpush1.msra.mxu0 0.0
    %302 = vmatprep.subr.mxu0 0.0
    %303 = vmatpush1.msra.mxu0 0.0
    %304 = vmatprep.subr.mxu0 0.0
    %305 = vmatpush1.msra.mxu0 0.0
    %306 = vmatprep.subr.mxu0 0.0
    %307 = vmatpush1.msra.mxu0 0.0
    %308 = vmatprep.subr.mxu0 0.0
    %309 = vmatpush1.msra.mxu0 0.0
    %310 = vmatprep.mubr.f32.mxu0 0.0
    %311 = vmatmul.mubr.f32.gmra.mrb[0].mxu0 %v241
    %v312 = vpop.f32.mrb[0].mxu0
    %v313 = vadd.f32 0.0, %v312
    %v314 = vpop.f32.mrb[0].mxu0
    %315 = vmatprep.mubr.f32.mxu0 0.0
    %316 = vmatmul.mubr.f32.gmra.mrb[0].mxu0 %v244
    %v317 = vpop.f32.mrb[0].mxu0
    %v318 = vadd.f32 0.0, %v317
    %v319 = vpop.f32.mrb[0].mxu0
    %320 = vdwg.mxu0
    %v321 = vld [vmem:[%s1 + $0x38] sm:$0x1]
    %v322 = vlaneseq
    %v323 = vshrl.u32 %v322, 7
    %v324 = vsub.s32 0, %v323
    %v325 = vrot.slane %v321, %v324
    %327 = vrot.lane.b32.xlu0 %v325, 64
    %v328 = vpop.permute.xlu0 %327
    %v330 = vadd.f32 %v313, %v328
    %v331 = vadd.f32 %v318, %v328
    %vm332 = vcmp.gt.f32.partialorder %v330, 20.0
    %vm333 = vcmp.gt.f32.partialorder %v331, 20.0
    %v334 = vmul.f32 %v330, 1.442695
    %v335 = vpow.pop %v334
    %v336 = vmul.f32 %v331, 1.442695
    %v337 = vpow.pop %v336
    %v338 = vadd.f32 %v335, 1.0
    %v339 = vlog2.pop %v338
    %v340 = vmul.f32 %v339, 0.6931472
    %v341 = vmul.f32 -0.5, %v335
    %v342 = vadd.f32 %v341, 1.0
    %v343 = vmul.f32 %v342, %v335
    %v344 = vand.u32 2147483647, %v335
    %vm345 = vcmp.lt.f32.partialorder %v344, 0.0004427343
    %v346 = vsel %vm345, %v343, %v340
    %v347 = vadd.f32 %v337, 1.0
    %v348 = vlog2.pop %v347
    %v349 = vmul.f32 %v348, 0.6931472
    %v350 = vmul.f32 -0.5, %v337
    %v351 = vadd.f32 %v350, 1.0
    %v352 = vmul.f32 %v351, %v337
    %v353 = vand.u32 2147483647, %v337
    %vm354 = vcmp.lt.f32.partialorder %v353, 0.0004427343
    %v355 = vsel %vm354, %v352, %v349
    %v356 = vsel %vm332, %v330, %v346
    %v357 = vsel %vm333, %v331, %v355
    %358 = vrot.lane.b32.xlu0 %v229, 64
    %v359 = vpop.permute.xlu0 %358
    %360 = vrot.lane.b32.xlu0 %v230, 64
    %v361 = vpop.permute.xlu0 %360
    %v364 = vmul.f32 %v356, %v359
    %v365 = vmul.f32 %v357, %v361
    %v366 = vld [vmem:[%s1 + $0x10] sm:$0xff]
    %v367 = vld [vmem:[%s1 + $0x18] sm:$0xff]
    %v368 = vld [vmem:[%s1 + $0x20] sm:$0xff]
    %v369 = vld [vmem:[%s1 + $0x28] sm:$0xff]
    %v372 = vcombine.high %v356, %v356
    %v374 = vunpack.c.l.s4 1966171168
    %v375 = vunpack.c.0.s8 %v374
    %v376 = vlaneseq
    %v377 = vshrl.u32 %v376, 7
    %v378 = vsub.s32 %v375, %v377
    %v379 = vrot.slane %v356, %v378
    %v381 = vunpack.c.l.s4 1966171168
    %v382 = vunpack.c.0.s8 %v381
    %v383 = vlaneseq
    %v384 = vshrl.u32 %v383, 7
    %v385 = vsub.s32 %v382, %v384
    %v386 = vrot.slane %v372, %v385
    %v387 = vcombine.high %v379, %v379
    %v388 = vcombine.high %v386, %v386
    %v390 = vunpack.c.l.s4 1966171168
    %v391 = vunpack.c.0.s8 %v390
    %v392 = vlaneseq
    %v393 = vshrl.u32 %v392, 7
    %v394 = vsub.s32 %v391, %v393
    %v395 = vrot.slane %v379, %v394
    %v397 = vunpack.c.l.s4 1966171168
    %v398 = vunpack.c.0.s8 %v397
    %v399 = vlaneseq
    %v400 = vshrl.u32 %v399, 7
    %v401 = vsub.s32 %v398, %v400
    %v402 = vrot.slane %v386, %v401
    %v404 = vunpack.c.l.s4 1966171168
    %v405 = vunpack.c.0.s8 %v404
    %v406 = vlaneseq
    %v407 = vshrl.u32 %v406, 7
    %v408 = vsub.s32 %v405, %v407
    %v409 = vrot.slane %v387, %v408
    %v411 = vunpack.c.l.s4 1966171168
    %v412 = vunpack.c.0.s8 %v411
    %v413 = vlaneseq
    %v414 = vshrl.u32 %v413, 7
    %v415 = vsub.s32 %v412, %v414
    %v416 = vrot.slane %v388, %v415
    %v417 = vcombine.high %v395, %v395
    %v418 = vcombine.high %v402, %v402
    %v419 = vcombine.high %v409, %v409
    %v420 = vcombine.high %v416, %v416
    %v421 = vcombine.high %v357, %v357
    %v423 = vunpack.c.l.s4 1966171168
    %v424 = vunpack.c.0.s8 %v423
    %v425 = vlaneseq
    %v426 = vshrl.u32 %v425, 7
    %v427 = vsub.s32 %v424, %v426
    %v428 = vrot.slane %v357, %v427
    %v430 = vunpack.c.l.s4 1966171168
    %v431 = vunpack.c.0.s8 %v430
    %v432 = vlaneseq
    %v433 = vshrl.u32 %v432, 7
    %v434 = vsub.s32 %v431, %v433
    %v435 = vrot.slane %v421, %v434
    %v436 = vcombine.high %v428, %v428
    %v437 = vcombine.high %v435, %v435
    %v439 = vunpack.c.l.s4 1966171168
    %v440 = vunpack.c.0.s8 %v439
    %v441 = vlaneseq
    %v442 = vshrl.u32 %v441, 7
    %v443 = vsub.s32 %v440, %v442
    %v444 = vrot.slane %v428, %v443
    %v446 = vunpack.c.l.s4 1966171168
    %v447 = vunpack.c.0.s8 %v446
    %v448 = vlaneseq
    %v449 = vshrl.u32 %v448, 7
    %v450 = vsub.s32 %v447, %v449
    %v451 = vrot.slane %v435, %v450
    %v453 = vunpack.c.l.s4 1966171168
    %v454 = vunpack.c.0.s8 %v453
    %v455 = vlaneseq
    %v456 = vshrl.u32 %v455, 7
    %v457 = vsub.s32 %v454, %v456
    %v458 = vrot.slane %v436, %v457
    %v460 = vunpack.c.l.s4 1966171168
    %v461 = vunpack.c.0.s8 %v460
    %v462 = vlaneseq
    %v463 = vshrl.u32 %v462, 7
    %v464 = vsub.s32 %v461, %v463
    %v465 = vrot.slane %v437, %v464
    %v466 = vcombine.high %v444, %v444
    %v467 = vcombine.high %v451, %v451
    %v468 = vcombine.high %v458, %v458
    %v469 = vcombine.high %v465, %v465
    %v470 = vlaneseq
    %v471 = vshrl.u32 %v470, 7
    %v472 = vsub.s32 0, %v471
    %v473 = vrot.slane %v409, %v472
    %v474 = vlaneseq
    %v475 = vshrl.u32 %v474, 7
    %v476 = vsub.s32 0, %v475
    %v477 = vrot.slane %v417, %v476
    %v478 = vlaneseq
    %v479 = vshrl.u32 %v478, 7
    %v480 = vsub.s32 0, %v479
    %v481 = vrot.slane %v419, %v480
    %v482 = vlaneseq
    %v483 = vshrl.u32 %v482, 7
    %v484 = vsub.s32 0, %v483
    %v485 = vrot.slane %v402, %v484
    %v486 = vlaneseq
    %v487 = vshrl.u32 %v486, 7
    %v488 = vsub.s32 0, %v487
    %v489 = vrot.slane %v416, %v488
    %v490 = vlaneseq
    %v491 = vshrl.u32 %v490, 7
    %v492 = vsub.s32 0, %v491
    %v493 = vrot.slane %v418, %v492
    %v494 = vlaneseq
    %v495 = vshrl.u32 %v494, 7
    %v496 = vsub.s32 0, %v495
    %v497 = vrot.slane %v420, %v496
    %v498 = vlaneseq
    %v499 = vshrl.u32 %v498, 7
    %v500 = vsub.s32 0, %v499
    %v501 = vrot.slane %v458, %v500
    %v502 = vlaneseq
    %v503 = vshrl.u32 %v502, 7
    %v504 = vsub.s32 0, %v503
    %v505 = vrot.slane %v466, %v504
    %v506 = vlaneseq
    %v507 = vshrl.u32 %v506, 7
    %v508 = vsub.s32 0, %v507
    %v509 = vrot.slane %v468, %v508
    %v510 = vlaneseq
    %v511 = vshrl.u32 %v510, 7
    %v512 = vsub.s32 0, %v511
    %v513 = vrot.slane %v451, %v512
    %v514 = vlaneseq
    %v515 = vshrl.u32 %v514, 7
    %v516 = vsub.s32 0, %v515
    %v517 = vrot.slane %v465, %v516
    %v518 = vlaneseq
    %v519 = vshrl.u32 %v518, 7
    %v520 = vsub.s32 0, %v519
    %v521 = vrot.slane %v467, %v520
    %v522 = vlaneseq
    %v523 = vshrl.u32 %v522, 7
    %v524 = vsub.s32 0, %v523
    %v525 = vrot.slane %v469, %v524
    %544 = vrot.lane.b32.xlu0 %v366, 64
    %v545 = vpop.permute.xlu0 %544
    %546 = vrot.lane.b32.xlu0 %v367, 64
    %v547 = vpop.permute.xlu0 %546
    %548 = vrot.lane.b32.xlu0 %v368, 64
    %v549 = vpop.permute.xlu0 %548
    %550 = vrot.lane.b32.xlu0 %v369, 64
    %v551 = vpop.permute.xlu0 %550
    %v556 = vmul.f32 %v473, %v545
    %v557 = vmul.f32 %v473, %v547
    %v558 = vmul.f32 %v473, %v549
    %v559 = vmul.f32 %v473, %v551
    %v560 = vmul.f32 %v477, %v545
    %v561 = vmul.f32 %v477, %v547
    %v562 = vmul.f32 %v477, %v549
    %v563 = vmul.f32 %v477, %v551
    %v564 = vmul.f32 %v481, %v545
    %v565 = vmul.f32 %v481, %v547
    %v566 = vmul.f32 %v481, %v549
    %v567 = vmul.f32 %v481, %v551
    %v568 = vmul.f32 %v485, %v545
    %v569 = vmul.f32 %v485, %v547
    %v570 = vmul.f32 %v485, %v549
    %v571 = vmul.f32 %v485, %v551
    %v572 = vmul.f32 %v489, %v545
    %v573 = vmul.f32 %v489, %v547
    %v574 = vmul.f32 %v489, %v549
    %v575 = vmul.f32 %v489, %v551
    %v576 = vmul.f32 %v493, %v545
    %v577 = vmul.f32 %v493, %v547
    %v578 = vmul.f32 %v493, %v549
    %v579 = vmul.f32 %v493, %v551
    %v580 = vmul.f32 %v497, %v545
    %v581 = vmul.f32 %v497, %v547
    %v582 = vmul.f32 %v497, %v549
    %v583 = vmul.f32 %v497, %v551
    %v584 = vmul.f32 %v501, %v545
    %v585 = vmul.f32 %v501, %v547
    %v586 = vmul.f32 %v501, %v549
    %v587 = vmul.f32 %v501, %v551
    %v588 = vmul.f32 %v505, %v545
    %v589 = vmul.f32 %v505, %v547
    %v590 = vmul.f32 %v505, %v549
    %v591 = vmul.f32 %v505, %v551
    %v592 = vmul.f32 %v509, %v545
    %v593 = vmul.f32 %v509, %v547
    %v594 = vmul.f32 %v509, %v549
    %v595 = vmul.f32 %v509, %v551
    %v596 = vmul.f32 %v513, %v545
    %v597 = vmul.f32 %v513, %v547
    %v598 = vmul.f32 %v513, %v549
    %v599 = vmul.f32 %v513, %v551
    %v600 = vmul.f32 %v517, %v545
    %v601 = vmul.f32 %v517, %v547
    %v602 = vmul.f32 %v517, %v549
    %v603 = vmul.f32 %v517, %v551
    %v604 = vmul.f32 %v521, %v545
    %v605 = vmul.f32 %v521, %v547
    %v606 = vmul.f32 %v521, %v549
    %v607 = vmul.f32 %v521, %v551
    %v608 = vmul.f32 %v525, %v545
    %v609 = vmul.f32 %v525, %v547
    %v610 = vmul.f32 %v525, %v549
    %v611 = vmul.f32 %v525, %v551
    %v612 = vmul.f32 %v556, 1.442695
    %v613 = vpow.pop %v612
    %v614 = vmul.f32 %v557, 1.442695
    %v615 = vpow.pop %v614
    %v616 = vmul.f32 %v558, 1.442695
    %v617 = vpow.pop %v616
    %v618 = vmul.f32 %v559, 1.442695
    %v619 = vpow.pop %v618
    %v620 = vmul.f32 %v560, 1.442695
    %v621 = vpow.pop %v620
    %v622 = vmul.f32 %v561, 1.442695
    %v623 = vpow.pop %v622
    %v624 = vmul.f32 %v562, 1.442695
    %v625 = vpow.pop %v624
    %v626 = vmul.f32 %v563, 1.442695
    %v627 = vpow.pop %v626
    %v628 = vmul.f32 %v564, 1.442695
    %v629 = vpow.pop %v628
    %v630 = vmul.f32 %v565, 1.442695
    %v631 = vpow.pop %v630
    %v632 = vmul.f32 %v566, 1.442695
    %v633 = vpow.pop %v632
    %v634 = vmul.f32 %v567, 1.442695
    %v635 = vpow.pop %v634
    %v636 = vmul.f32 %v568, 1.442695
    %v637 = vpow.pop %v636
    %v638 = vmul.f32 %v569, 1.442695
    %v639 = vpow.pop %v638
    %v640 = vmul.f32 %v570, 1.442695
    %v641 = vpow.pop %v640
    %v642 = vmul.f32 %v571, 1.442695
    %v643 = vpow.pop %v642
    %v644 = vmul.f32 %v572, 1.442695
    %v645 = vpow.pop %v644
    %v646 = vmul.f32 %v573, 1.442695
    %v647 = vpow.pop %v646
    %v648 = vmul.f32 %v574, 1.442695
    %v649 = vpow.pop %v648
    %v650 = vmul.f32 %v575, 1.442695
    %v651 = vpow.pop %v650
    %v652 = vmul.f32 %v576, 1.442695
    %v653 = vpow.pop %v652
    %v654 = vmul.f32 %v577, 1.442695
    %v655 = vpow.pop %v654
    %v656 = vmul.f32 %v578, 1.442695
    %v657 = vpow.pop %v656
    %v658 = vmul.f32 %v579, 1.442695
    %v659 = vpow.pop %v658
    %v660 = vmul.f32 %v580, 1.442695
    %v661 = vpow.pop %v660
    %v662 = vmul.f32 %v581, 1.442695
    %v663 = vpow.pop %v662
    %v664 = vmul.f32 %v582, 1.442695
    %v665 = vpow.pop %v664
    %v666 = vmul.f32 %v583, 1.442695
    %v667 = vpow.pop %v666
    %v668 = vmul.f32 %v584, 1.442695
    %v669 = vpow.pop %v668
    %v670 = vmul.f32 %v585, 1.442695
    %v671 = vpow.pop %v670
    %v672 = vmul.f32 %v586, 1.442695
    %v673 = vpow.pop %v672
    %v674 = vmul.f32 %v587, 1.442695
    %v675 = vpow.pop %v674
    %v676 = vmul.f32 %v588, 1.442695
    %v677 = vpow.pop %v676
    %v678 = vmul.f32 %v589, 1.442695
    %v679 = vpow.pop %v678
    %v680 = vmul.f32 %v590, 1.442695
    %v681 = vpow.pop %v680
    %v682 = vmul.f32 %v591, 1.442695
    %v683 = vpow.pop %v682
    %v684 = vmul.f32 %v592, 1.442695
    %v685 = vpow.pop %v684
    %v686 = vmul.f32 %v593, 1.442695
    %v687 = vpow.pop %v686
    %v688 = vmul.f32 %v594, 1.442695
    %v689 = vpow.pop %v688
    %v690 = vmul.f32 %v595, 1.442695
    %v691 = vpow.pop %v690
    %v692 = vmul.f32 %v596, 1.442695
    %v693 = vpow.pop %v692
    %v694 = vmul.f32 %v597, 1.442695
    %v695 = vpow.pop %v694
    %v696 = vmul.f32 %v598, 1.442695
    %v697 = vpow.pop %v696
    %v698 = vmul.f32 %v599, 1.442695
    %v699 = vpow.pop %v698
    %v700 = vmul.f32 %v600, 1.442695
    %v701 = vpow.pop %v700
    %v702 = vmul.f32 %v601, 1.442695
    %v703 = vpow.pop %v702
    %v704 = vmul.f32 %v602, 1.442695
    %v705 = vpow.pop %v704
    %v706 = vmul.f32 %v603, 1.442695
    %v707 = vpow.pop %v706
    %v708 = vmul.f32 %v604, 1.442695
    %v709 = vpow.pop %v708
    %v710 = vmul.f32 %v605, 1.442695
    %v711 = vpow.pop %v710
    %v712 = vmul.f32 %v606, 1.442695
    %v713 = vpow.pop %v712
    %v714 = vmul.f32 %v607, 1.442695
    %v715 = vpow.pop %v714
    %v716 = vmul.f32 %v608, 1.442695
    %v717 = vpow.pop %v716
    %v718 = vmul.f32 %v609, 1.442695
    %v719 = vpow.pop %v718
    %v720 = vmul.f32 %v610, 1.442695
    %v721 = vpow.pop %v720
    %v722 = vmul.f32 %v611, 1.442695
    %v723 = vpow.pop %v722
    %v724 = vlaneseq
    %v725 = vshrl.u32 %v724, 7
    %v726 = vsub.s32 0, %v725
    %v727 = vrot.slane %v313, %v726
    %729 = vbcast.lane.b32.xlu0 %v727, 256
    %v730 = vpop.permute.xlu0 %729
    %s732 = sor.u32 256, 8
    %733 = vbcast.lane.b32.xlu0 %v727, %s732
    %v734 = vpop.permute.xlu0 %733
    %s736 = sor.u32 256, 16
    %737 = vbcast.lane.b32.xlu0 %v727, %s736
    %v738 = vpop.permute.xlu0 %737
    %s740 = sor.u32 256, 24
    %741 = vbcast.lane.b32.xlu0 %v727, %s740
    %v742 = vpop.permute.xlu0 %741
    %v743 = vlaneseq
    %v744 = vshrl.u32 %v743, 7
    %v745 = vsub.s32 1, %v744
    %v746 = vrot.slane %v313, %v745
    %748 = vbcast.lane.b32.xlu0 %v746, 256
    %v749 = vpop.permute.xlu0 %748
    %s751 = sor.u32 256, 8
    %752 = vbcast.lane.b32.xlu0 %v746, %s751
    %v753 = vpop.permute.xlu0 %752
    %s755 = sor.u32 256, 16
    %756 = vbcast.lane.b32.xlu0 %v746, %s755
    %v757 = vpop.permute.xlu0 %756
    %s759 = sor.u32 256, 24
    %760 = vbcast.lane.b32.xlu0 %v746, %s759
    %v761 = vpop.permute.xlu0 %760
    %v762 = vlaneseq
    %v763 = vshrl.u32 %v762, 7
    %v764 = vsub.s32 2, %v763
    %v765 = vrot.slane %v313, %v764
    %767 = vbcast.lane.b32.xlu0 %v765, 256
    %v768 = vpop.permute.xlu0 %767
    %s770 = sor.u32 256, 8
    %771 = vbcast.lane.b32.xlu0 %v765, %s770
    %v772 = vpop.permute.xlu0 %771
    %s774 = sor.u32 256, 16
    %775 = vbcast.lane.b32.xlu0 %v765, %s774
    %v776 = vpop.permute.xlu0 %775
    %s778 = sor.u32 256, 24
    %779 = vbcast.lane.b32.xlu0 %v765, %s778
    %v780 = vpop.permute.xlu0 %779
    %v781 = vlaneseq
    %v782 = vshrl.u32 %v781, 7
    %v783 = vsub.s32 3, %v782
    %v784 = vrot.slane %v313, %v783
    %786 = vbcast.lane.b32.xlu0 %v784, 256
    %v787 = vpop.permute.xlu0 %786
    %s789 = sor.u32 256, 8
    %790 = vbcast.lane.b32.xlu0 %v784, %s789
    %v791 = vpop.permute.xlu0 %790
    %s793 = sor.u32 256, 16
    %794 = vbcast.lane.b32.xlu0 %v784, %s793
    %v795 = vpop.permute.xlu0 %794
    %s797 = sor.u32 256, 24
    %798 = vbcast.lane.b32.xlu0 %v784, %s797
    %v799 = vpop.permute.xlu0 %798
    %v800 = vlaneseq
    %v801 = vshrl.u32 %v800, 7
    %v802 = vsub.s32 4, %v801
    %v803 = vrot.slane %v313, %v802
    %805 = vbcast.lane.b32.xlu0 %v803, 256
    %v806 = vpop.permute.xlu0 %805
    %s808 = sor.u32 256, 8
    %809 = vbcast.lane.b32.xlu0 %v803, %s808
    %v810 = vpop.permute.xlu0 %809
    %s812 = sor.u32 256, 16
    %813 = vbcast.lane.b32.xlu0 %v803, %s812
    %v814 = vpop.permute.xlu0 %813
    %s816 = sor.u32 256, 24
    %817 = vbcast.lane.b32.xlu0 %v803, %s816
    %v818 = vpop.permute.xlu0 %817
    %v819 = vlaneseq
    %v820 = vshrl.u32 %v819, 7
    %v821 = vsub.s32 5, %v820
    %v822 = vrot.slane %v313, %v821
    %824 = vbcast.lane.b32.xlu0 %v822, 256
    %v825 = vpop.permute.xlu0 %824
    %s827 = sor.u32 256, 8
    %828 = vbcast.lane.b32.xlu0 %v822, %s827
    %v829 = vpop.permute.xlu0 %828
    %s831 = sor.u32 256, 16
    %832 = vbcast.lane.b32.xlu0 %v822, %s831
    %v833 = vpop.permute.xlu0 %832
    %s835 = sor.u32 256, 24
    %836 = vbcast.lane.b32.xlu0 %v822, %s835
    %v837 = vpop.permute.xlu0 %836
    %v838 = vlaneseq
    %v839 = vshrl.u32 %v838, 7
    %v840 = vsub.s32 6, %v839
    %v841 = vrot.slane %v313, %v840
    %843 = vbcast.lane.b32.xlu0 %v841, 256
    %v844 = vpop.permute.xlu0 %843
    %s846 = sor.u32 256, 8
    %847 = vbcast.lane.b32.xlu0 %v841, %s846
    %v848 = vpop.permute.xlu0 %847
    %s850 = sor.u32 256, 16
    %851 = vbcast.lane.b32.xlu0 %v841, %s850
    %v852 = vpop.permute.xlu0 %851
    %s854 = sor.u32 256, 24
    %855 = vbcast.lane.b32.xlu0 %v841, %s854
    %v856 = vpop.permute.xlu0 %855
    %v857 = vlaneseq
    %v858 = vshrl.u32 %v857, 7
    %v859 = vsub.s32 7, %v858
    %v860 = vrot.slane %v313, %v859
    %862 = vbcast.lane.b32.xlu0 %v860, 256
    %v863 = vpop.permute.xlu0 %862
    %s865 = sor.u32 256, 8
    %866 = vbcast.lane.b32.xlu0 %v860, %s865
    %v867 = vpop.permute.xlu0 %866
    %s869 = sor.u32 256, 16
    %870 = vbcast.lane.b32.xlu0 %v860, %s869
    %v871 = vpop.permute.xlu0 %870
    %s873 = sor.u32 256, 24
    %874 = vbcast.lane.b32.xlu0 %v860, %s873
    %v875 = vpop.permute.xlu0 %874
    %v876 = vlaneseq
    %v877 = vshrl.u32 %v876, 7
    %v878 = vsub.s32 0, %v877
    %v879 = vrot.slane %v318, %v878
    %881 = vbcast.lane.b32.xlu0 %v879, 256
    %v882 = vpop.permute.xlu0 %881
    %s884 = sor.u32 256, 8
    %885 = vbcast.lane.b32.xlu0 %v879, %s884
    %v886 = vpop.permute.xlu0 %885
    %s888 = sor.u32 256, 16
    %889 = vbcast.lane.b32.xlu0 %v879, %s888
    %v890 = vpop.permute.xlu0 %889
    %s892 = sor.u32 256, 24
    %893 = vbcast.lane.b32.xlu0 %v879, %s892
    %v894 = vpop.permute.xlu0 %893
    %v895 = vlaneseq
    %v896 = vshrl.u32 %v895, 7
    %v897 = vsub.s32 1, %v896
    %v898 = vrot.slane %v318, %v897
    %900 = vbcast.lane.b32.xlu0 %v898, 256
    %v901 = vpop.permute.xlu0 %900
    %s903 = sor.u32 256, 8
    %904 = vbcast.lane.b32.xlu0 %v898, %s903
    %v905 = vpop.permute.xlu0 %904
    %s907 = sor.u32 256, 16
    %908 = vbcast.lane.b32.xlu0 %v898, %s907
    %v909 = vpop.permute.xlu0 %908
    %s911 = sor.u32 256, 24
    %912 = vbcast.lane.b32.xlu0 %v898, %s911
    %v913 = vpop.permute.xlu0 %912
    %v914 = vlaneseq
    %v915 = vshrl.u32 %v914, 7
    %v916 = vsub.s32 2, %v915
    %v917 = vrot.slane %v318, %v916
    %919 = vbcast.lane.b32.xlu0 %v917, 256
    %v920 = vpop.permute.xlu0 %919
    %s922 = sor.u32 256, 8
    %923 = vbcast.lane.b32.xlu0 %v917, %s922
    %v924 = vpop.permute.xlu0 %923
    %s926 = sor.u32 256, 16
    %927 = vbcast.lane.b32.xlu0 %v917, %s926
    %v928 = vpop.permute.xlu0 %927
    %s930 = sor.u32 256, 24
    %931 = vbcast.lane.b32.xlu0 %v917, %s930
    %v932 = vpop.permute.xlu0 %931
    %v933 = vlaneseq
    %v934 = vshrl.u32 %v933, 7
    %v935 = vsub.s32 3, %v934
    %v936 = vrot.slane %v318, %v935
    %938 = vbcast.lane.b32.xlu0 %v936, 256
    %v939 = vpop.permute.xlu0 %938
    %s941 = sor.u32 256, 8
    %942 = vbcast.lane.b32.xlu0 %v936, %s941
    %v943 = vpop.permute.xlu0 %942
    %s945 = sor.u32 256, 16
    %946 = vbcast.lane.b32.xlu0 %v936, %s945
    %v947 = vpop.permute.xlu0 %946
    %s949 = sor.u32 256, 24
    %950 = vbcast.lane.b32.xlu0 %v936, %s949
    %v951 = vpop.permute.xlu0 %950
    %v952 = vlaneseq
    %v953 = vshrl.u32 %v952, 7
    %v954 = vsub.s32 4, %v953
    %v955 = vrot.slane %v318, %v954
    %957 = vbcast.lane.b32.xlu0 %v955, 256
    %v958 = vpop.permute.xlu0 %957
    %s960 = sor.u32 256, 8
    %961 = vbcast.lane.b32.xlu0 %v955, %s960
    %v962 = vpop.permute.xlu0 %961
    %s964 = sor.u32 256, 16
    %965 = vbcast.lane.b32.xlu0 %v955, %s964
    %v966 = vpop.permute.xlu0 %965
    %s968 = sor.u32 256, 24
    %969 = vbcast.lane.b32.xlu0 %v955, %s968
    %v970 = vpop.permute.xlu0 %969
    %v971 = vlaneseq
    %v972 = vshrl.u32 %v971, 7
    %v973 = vsub.s32 5, %v972
    %v974 = vrot.slane %v318, %v973
    %976 = vbcast.lane.b32.xlu0 %v974, 256
    %v977 = vpop.permute.xlu0 %976
    %s979 = sor.u32 256, 8
    %980 = vbcast.lane.b32.xlu0 %v974, %s979
    %v981 = vpop.permute.xlu0 %980
    %s983 = sor.u32 256, 16
    %984 = vbcast.lane.b32.xlu0 %v974, %s983
    %v985 = vpop.permute.xlu0 %984
    %s987 = sor.u32 256, 24
    %988 = vbcast.lane.b32.xlu0 %v974, %s987
    %v989 = vpop.permute.xlu0 %988
    %v990 = vlaneseq
    %v991 = vshrl.u32 %v990, 7
    %v992 = vsub.s32 6, %v991
    %v993 = vrot.slane %v318, %v992
    %995 = vbcast.lane.b32.xlu0 %v993, 256
    %v996 = vpop.permute.xlu0 %995
    %s998 = sor.u32 256, 8
    %999 = vbcast.lane.b32.xlu0 %v993, %s998
    %v1000 = vpop.permute.xlu0 %999
    %s1002 = sor.u32 256, 16
    %1003 = vbcast.lane.b32.xlu0 %v993, %s1002
    %v1004 = vpop.permute.xlu0 %1003
    %s1006 = sor.u32 256, 24
    %1007 = vbcast.lane.b32.xlu0 %v993, %s1006
    %v1008 = vpop.permute.xlu0 %1007
    %v1009 = vlaneseq
    %v1010 = vshrl.u32 %v1009, 7
    %v1011 = vsub.s32 7, %v1010
    %v1012 = vrot.slane %v318, %v1011
    %1014 = vbcast.lane.b32.xlu0 %v1012, 256
    %v1015 = vpop.permute.xlu0 %1014
    %s1017 = sor.u32 256, 8
    %1018 = vbcast.lane.b32.xlu0 %v1012, %s1017
    %v1019 = vpop.permute.xlu0 %1018
    %s1021 = sor.u32 256, 16
    %1022 = vbcast.lane.b32.xlu0 %v1012, %s1021
    %v1023 = vpop.permute.xlu0 %1022
    %s1025 = sor.u32 256, 24
    %1026 = vbcast.lane.b32.xlu0 %v1012, %s1025
    %v1027 = vpop.permute.xlu0 %1026
    %v1030 = vcombine.high %v364, %v364
    %v1032 = vunpack.c.l.s4 1966171168
    %v1033 = vunpack.c.0.s8 %v1032
    %v1034 = vlaneseq
    %v1035 = vshrl.u32 %v1034, 7
    %v1036 = vsub.s32 %v1033, %v1035
    %v1037 = vrot.slane %v364, %v1036
    %v1039 = vunpack.c.l.s4 1966171168
    %v1040 = vunpack.c.0.s8 %v1039
    %v1041 = vlaneseq
    %v1042 = vshrl.u32 %v1041, 7
    %v1043 = vsub.s32 %v1040, %v1042
    %v1044 = vrot.slane %v1030, %v1043
    %v1045 = vcombine.high %v1037, %v1037
    %v1046 = vcombine.high %v1044, %v1044
    %v1048 = vunpack.c.l.s4 1966171168
    %v1049 = vunpack.c.0.s8 %v1048
    %v1050 = vlaneseq
    %v1051 = vshrl.u32 %v1050, 7
    %v1052 = vsub.s32 %v1049, %v1051
    %v1053 = vrot.slane %v1037, %v1052
    %v1055 = vunpack.c.l.s4 1966171168
    %v1056 = vunpack.c.0.s8 %v1055
    %v1057 = vlaneseq
    %v1058 = vshrl.u32 %v1057, 7
    %v1059 = vsub.s32 %v1056, %v1058
    %v1060 = vrot.slane %v1044, %v1059
    %v1062 = vunpack.c.l.s4 1966171168
    %v1063 = vunpack.c.0.s8 %v1062
    %v1064 = vlaneseq
    %v1065 = vshrl.u32 %v1064, 7
    %v1066 = vsub.s32 %v1063, %v1065
    %v1067 = vrot.slane %v1045, %v1066
    %v1069 = vunpack.c.l.s4 1966171168
    %v1070 = vunpack.c.0.s8 %v1069
    %v1071 = vlaneseq
    %v1072 = vshrl.u32 %v1071, 7
    %v1073 = vsub.s32 %v1070, %v1072
    %v1074 = vrot.slane %v1046, %v1073
    %v1075 = vcombine.high %v1053, %v1053
    %v1076 = vcombine.high %v1060, %v1060
    %v1077 = vcombine.high %v1067, %v1067
    %v1078 = vcombine.high %v1074, %v1074
    %v1079 = vcombine.high %v365, %v365
    %v1081 = vunpack.c.l.s4 1966171168
    %v1082 = vunpack.c.0.s8 %v1081
    %v1083 = vlaneseq
    %v1084 = vshrl.u32 %v1083, 7
    %v1085 = vsub.s32 %v1082, %v1084
    %v1086 = vrot.slane %v365, %v1085
    %v1088 = vunpack.c.l.s4 1966171168
    %v1089 = vunpack.c.0.s8 %v1088
    %v1090 = vlaneseq
    %v1091 = vshrl.u32 %v1090, 7
    %v1092 = vsub.s32 %v1089, %v1091
    %v1093 = vrot.slane %v1079, %v1092
    %v1094 = vcombine.high %v1086, %v1086
    %v1095 = vcombine.high %v1093, %v1093
    %v1097 = vunpack.c.l.s4 1966171168
    %v1098 = vunpack.c.0.s8 %v1097
    %v1099 = vlaneseq
    %v1100 = vshrl.u32 %v1099, 7
    %v1101 = vsub.s32 %v1098, %v1100
    %v1102 = vrot.slane %v1086, %v1101
    %v1104 = vunpack.c.l.s4 1966171168
    %v1105 = vunpack.c.0.s8 %v1104
    %v1106 = vlaneseq
    %v1107 = vshrl.u32 %v1106, 7
    %v1108 = vsub.s32 %v1105, %v1107
    %v1109 = vrot.slane %v1093, %v1108
    %v1111 = vunpack.c.l.s4 1966171168
    %v1112 = vunpack.c.0.s8 %v1111
    %v1113 = vlaneseq
    %v1114 = vshrl.u32 %v1113, 7
    %v1115 = vsub.s32 %v1112, %v1114
    %v1116 = vrot.slane %v1094, %v1115
    %v1118 = vunpack.c.l.s4 1966171168
    %v1119 = vunpack.c.0.s8 %v1118
    %v1120 = vlaneseq
    %v1121 = vshrl.u32 %v1120, 7
    %v1122 = vsub.s32 %v1119, %v1121
    %v1123 = vrot.slane %v1095, %v1122
    %v1124 = vcombine.high %v1102, %v1102
    %v1125 = vcombine.high %v1109, %v1109
    %v1126 = vcombine.high %v1116, %v1116
    %v1127 = vcombine.high %v1123, %v1123
    %v1128 = vlaneseq
    %v1129 = vshrl.u32 %v1128, 7
    %v1130 = vsub.s32 0, %v1129
    %v1131 = vrot.slane %v1053, %v1130
    %v1132 = vlaneseq
    %v1133 = vshrl.u32 %v1132, 7
    %v1134 = vsub.s32 0, %v1133
    %v1135 = vrot.slane %v1067, %v1134
    %v1136 = vlaneseq
    %v1137 = vshrl.u32 %v1136, 7
    %v1138 = vsub.s32 0, %v1137
    %v1139 = vrot.slane %v1075, %v1138
    %v1140 = vlaneseq
    %v1141 = vshrl.u32 %v1140, 7
    %v1142 = vsub.s32 0, %v1141
    %v1143 = vrot.slane %v1077, %v1142
    %v1144 = vlaneseq
    %v1145 = vshrl.u32 %v1144, 7
    %v1146 = vsub.s32 0, %v1145
    %v1147 = vrot.slane %v1060, %v1146
    %v1148 = vlaneseq
    %v1149 = vshrl.u32 %v1148, 7
    %v1150 = vsub.s32 0, %v1149
    %v1151 = vrot.slane %v1074, %v1150
    %v1152 = vlaneseq
    %v1153 = vshrl.u32 %v1152, 7
    %v1154 = vsub.s32 0, %v1153
    %v1155 = vrot.slane %v1076, %v1154
    %v1156 = vlaneseq
    %v1157 = vshrl.u32 %v1156, 7
    %v1158 = vsub.s32 0, %v1157
    %v1159 = vrot.slane %v1078, %v1158
    %v1160 = vlaneseq
    %v1161 = vshrl.u32 %v1160, 7
    %v1162 = vsub.s32 0, %v1161
    %v1163 = vrot.slane %v1102, %v1162
    %v1164 = vlaneseq
    %v1165 = vshrl.u32 %v1164, 7
    %v1166 = vsub.s32 0, %v1165
    %v1167 = vrot.slane %v1116, %v1166
    %v1168 = vlaneseq
    %v1169 = vshrl.u32 %v1168, 7
    %v1170 = vsub.s32 0, %v1169
    %v1171 = vrot.slane %v1124, %v1170
    %v1172 = vlaneseq
    %v1173 = vshrl.u32 %v1172, 7
    %v1174 = vsub.s32 0, %v1173
    %v1175 = vrot.slane %v1126, %v1174
    %v1176 = vlaneseq
    %v1177 = vshrl.u32 %v1176, 7
    %v1178 = vsub.s32 0, %v1177
    %v1179 = vrot.slane %v1109, %v1178
    %v1180 = vlaneseq
    %v1181 = vshrl.u32 %v1180, 7
    %v1182 = vsub.s32 0, %v1181
    %v1183 = vrot.slane %v1123, %v1182
    %v1184 = vlaneseq
    %v1185 = vshrl.u32 %v1184, 7
    %v1186 = vsub.s32 0, %v1185
    %v1187 = vrot.slane %v1125, %v1186
    %v1188 = vlaneseq
    %v1189 = vshrl.u32 %v1188, 7
    %v1190 = vsub.s32 0, %v1189
    %v1191 = vrot.slane %v1127, %v1190
    %v1208 = vmul.f32 %v730, %v1131
    %v1209 = vmul.f32 %v734, %v1131
    %v1210 = vmul.f32 %v738, %v1131
    %v1211 = vmul.f32 %v742, %v1131
    %v1212 = vmul.f32 %v749, %v1135
    %v1213 = vmul.f32 %v753, %v1135
    %v1214 = vmul.f32 %v757, %v1135
    %v1215 = vmul.f32 %v761, %v1135
    %v1216 = vmul.f32 %v768, %v1139
    %v1217 = vmul.f32 %v772, %v1139
    %v1218 = vmul.f32 %v776, %v1139
    %v1219 = vmul.f32 %v780, %v1139
    %v1220 = vmul.f32 %v787, %v1143
    %v1221 = vmul.f32 %v791, %v1143
    %v1222 = vmul.f32 %v795, %v1143
    %v1223 = vmul.f32 %v799, %v1143
    %v1224 = vmul.f32 %v806, %v1147
    %v1225 = vmul.f32 %v810, %v1147
    %v1226 = vmul.f32 %v814, %v1147
    %v1227 = vmul.f32 %v818, %v1147
    %v1228 = vmul.f32 %v825, %v1151
    %v1229 = vmul.f32 %v829, %v1151
    %v1230 = vmul.f32 %v833, %v1151
    %v1231 = vmul.f32 %v837, %v1151
    %v1232 = vmul.f32 %v844, %v1155
    %v1233 = vmul.f32 %v848, %v1155
    %v1234 = vmul.f32 %v852, %v1155
    %v1235 = vmul.f32 %v856, %v1155
    %v1236 = vmul.f32 %v863, %v1159
    %v1237 = vmul.f32 %v867, %v1159
    %v1238 = vmul.f32 %v871, %v1159
    %v1239 = vmul.f32 %v875, %v1159
    %v1240 = vmul.f32 %v882, %v1163
    %v1241 = vmul.f32 %v886, %v1163
    %v1242 = vmul.f32 %v890, %v1163
    %v1243 = vmul.f32 %v894, %v1163
    %v1244 = vmul.f32 %v901, %v1167
    %v1245 = vmul.f32 %v905, %v1167
    %v1246 = vmul.f32 %v909, %v1167
    %v1247 = vmul.f32 %v913, %v1167
    %v1248 = vmul.f32 %v920, %v1171
    %v1249 = vmul.f32 %v924, %v1171
    %v1250 = vmul.f32 %v928, %v1171
    %v1251 = vmul.f32 %v932, %v1171
    %v1252 = vmul.f32 %v939, %v1175
    %v1253 = vmul.f32 %v943, %v1175
    %v1254 = vmul.f32 %v947, %v1175
    %v1255 = vmul.f32 %v951, %v1175
    %v1256 = vmul.f32 %v958, %v1179
    %v1257 = vmul.f32 %v962, %v1179
    %v1258 = vmul.f32 %v966, %v1179
    %v1259 = vmul.f32 %v970, %v1179
    %v1260 = vmul.f32 %v977, %v1183
    %v1261 = vmul.f32 %v981, %v1183
    %v1262 = vmul.f32 %v985, %v1183
    %v1263 = vmul.f32 %v989, %v1183
    %v1264 = vmul.f32 %v996, %v1187
    %v1265 = vmul.f32 %v1000, %v1187
    %v1266 = vmul.f32 %v1004, %v1187
    %v1267 = vmul.f32 %v1008, %v1187
    %v1268 = vmul.f32 %v1015, %v1191
    %v1269 = vmul.f32 %v1019, %v1191
    %v1270 = vmul.f32 %v1023, %v1191
    %v1271 = vmul.f32 %v1027, %v1191
    %v1272 = vmul.f32 %v613, %v1208
    %v1273 = vmul.f32 %v615, %v1209
    %v1274 = vmul.f32 %v617, %v1210
    %v1275 = vmul.f32 %v619, %v1211
    %v1276 = vmul.f32 %v669, %v1240
    %v1277 = vmul.f32 %v671, %v1241
    %v1278 = vmul.f32 %v673, %v1242
    %v1279 = vmul.f32 %v675, %v1243
    %v1280 = vadd.f32 %v1272, %v1212
    %v1281 = vadd.f32 %v1273, %v1213
    %v1282 = vadd.f32 %v1274, %v1214
    %v1283 = vadd.f32 %v1275, %v1215
    %v1284 = vadd.f32 %v1276, %v1244
    %v1285 = vadd.f32 %v1277, %v1245
    %v1286 = vadd.f32 %v1278, %v1246
    %v1287 = vadd.f32 %v1279, %v1247
    %v1288 = vmul.f32 %v621, %v1280
    %v1289 = vmul.f32 %v623, %v1281
    %v1290 = vmul.f32 %v625, %v1282
    %v1291 = vmul.f32 %v627, %v1283
    %v1292 = vmul.f32 %v677, %v1284
    %v1293 = vmul.f32 %v679, %v1285
    %v1294 = vmul.f32 %v681, %v1286
    %v1295 = vmul.f32 %v683, %v1287
    %v1296 = vadd.f32 %v1288, %v1216
    %v1297 = vadd.f32 %v1289, %v1217
    %v1298 = vadd.f32 %v1290, %v1218
    %v1299 = vadd.f32 %v1291, %v1219
    %v1300 = vadd.f32 %v1292, %v1248
    %v1301 = vadd.f32 %v1293, %v1249
    %v1302 = vadd.f32 %v1294, %v1250
    %v1303 = vadd.f32 %v1295, %v1251
    %v1304 = vmul.f32 %v629, %v1296
    %v1305 = vmul.f32 %v631, %v1297
    %v1306 = vmul.f32 %v633, %v1298
    %v1307 = vmul.f32 %v635, %v1299
    %v1308 = vmul.f32 %v685, %v1300
    %v1309 = vmul.f32 %v687, %v1301
    %v1310 = vmul.f32 %v689, %v1302
    %v1311 = vmul.f32 %v691, %v1303
    %v1312 = vadd.f32 %v1304, %v1220
    %v1313 = vadd.f32 %v1305, %v1221
    %v1314 = vadd.f32 %v1306, %v1222
    %v1315 = vadd.f32 %v1307, %v1223
    %v1316 = vadd.f32 %v1308, %v1252
    %v1317 = vadd.f32 %v1309, %v1253
    %v1318 = vadd.f32 %v1310, %v1254
    %v1319 = vadd.f32 %v1311, %v1255
    %v1320 = vmul.f32 %v637, %v1312
    %v1321 = vmul.f32 %v639, %v1313
    %v1322 = vmul.f32 %v641, %v1314
    %v1323 = vmul.f32 %v643, %v1315
    %v1324 = vmul.f32 %v693, %v1316
    %v1325 = vmul.f32 %v695, %v1317
    %v1326 = vmul.f32 %v697, %v1318
    %v1327 = vmul.f32 %v699, %v1319
    %v1328 = vadd.f32 %v1320, %v1224
    %v1329 = vadd.f32 %v1321, %v1225
    %v1330 = vadd.f32 %v1322, %v1226
    %v1331 = vadd.f32 %v1323, %v1227
    %v1332 = vadd.f32 %v1324, %v1256
    %v1333 = vadd.f32 %v1325, %v1257
    %v1334 = vadd.f32 %v1326, %v1258
    %v1335 = vadd.f32 %v1327, %v1259
    %v1336 = vmul.f32 %v645, %v1328
    %v1337 = vmul.f32 %v647, %v1329
    %v1338 = vmul.f32 %v649, %v1330
    %v1339 = vmul.f32 %v651, %v1331
    %v1340 = vmul.f32 %v701, %v1332
    %v1341 = vmul.f32 %v703, %v1333
    %v1342 = vmul.f32 %v705, %v1334
    %v1343 = vmul.f32 %v707, %v1335
    %v1344 = vadd.f32 %v1336, %v1228
    %v1345 = vadd.f32 %v1337, %v1229
    %v1346 = vadd.f32 %v1338, %v1230
    %v1347 = vadd.f32 %v1339, %v1231
    %v1348 = vadd.f32 %v1340, %v1260
    %v1349 = vadd.f32 %v1341, %v1261
    %v1350 = vadd.f32 %v1342, %v1262
    %v1351 = vadd.f32 %v1343, %v1263
    %v1352 = vmul.f32 %v653, %v1344
    %v1353 = vmul.f32 %v655, %v1345
    %v1354 = vmul.f32 %v657, %v1346
    %v1355 = vmul.f32 %v659, %v1347
    %v1356 = vmul.f32 %v709, %v1348
    %v1357 = vmul.f32 %v711, %v1349
    %v1358 = vmul.f32 %v713, %v1350
    %v1359 = vmul.f32 %v715, %v1351
    %v1360 = vadd.f32 %v1352, %v1232
    %v1361 = vadd.f32 %v1353, %v1233
    %v1362 = vadd.f32 %v1354, %v1234
    %v1363 = vadd.f32 %v1355, %v1235
    %v1364 = vadd.f32 %v1356, %v1264
    %v1365 = vadd.f32 %v1357, %v1265
    %v1366 = vadd.f32 %v1358, %v1266
    %v1367 = vadd.f32 %v1359, %v1267
    %v1368 = vmul.f32 %v661, %v1360
    %v1369 = vmul.f32 %v663, %v1361
    %v1370 = vmul.f32 %v665, %v1362
    %v1371 = vmul.f32 %v667, %v1363
    %v1372 = vmul.f32 %v717, %v1364
    %v1373 = vmul.f32 %v719, %v1365
    %v1374 = vmul.f32 %v721, %v1366
    %v1375 = vmul.f32 %v723, %v1367
    %v1376 = vadd.f32 %v1368, %v1236
    %v1377 = vadd.f32 %v1369, %v1237
    %v1378 = vadd.f32 %v1370, %v1238
    %v1379 = vadd.f32 %v1371, %v1239
    %v1380 = vadd.f32 %v1372, %v1268
    %v1381 = vadd.f32 %v1373, %v1269
    %v1382 = vadd.f32 %v1374, %v1270
    %v1383 = vadd.f32 %v1375, %v1271
    %v1385 = vrot.slane %v313, 7
    %v1388 = vrot.slane %v318, 6
    %vm1390 = vcmask 1040384
    %v1391 = vsel %vm1390, %v1385, %v1388
    %v1392 = vlaneseq
    %v1393 = vshrl.u32 %v1392, 7
    %v1394 = vsub.s32 0, %v1393
    %v1395 = vrot.slane %v1391, %v1394
    %s1397 = sor.u32 256, 32
    %1398 = vbcast.lane.b32.xlu0 %v1395, %s1397
    %v1399 = vpop.permute.xlu0 %1398
    %s1401 = sor.u32 256, 40
    %1402 = vbcast.lane.b32.xlu0 %v1395, %s1401
    %v1403 = vpop.permute.xlu0 %1402
    %s1405 = sor.u32 256, 48
    %1406 = vbcast.lane.b32.xlu0 %v1395, %s1405
    %v1407 = vpop.permute.xlu0 %1406
    %s1409 = sor.u32 256, 56
    %1410 = vbcast.lane.b32.xlu0 %v1395, %s1409
    %v1411 = vpop.permute.xlu0 %1410
    %v1412 = vlaneseq
    %v1413 = vshrl.u32 %v1412, 7
    %v1414 = vsub.s32 1, %v1413
    %v1415 = vrot.slane %v1391, %v1414
    %s1417 = sor.u32 256, 32
    %1418 = vbcast.lane.b32.xlu0 %v1415, %s1417
    %v1419 = vpop.permute.xlu0 %1418
    %s1421 = sor.u32 256, 40
    %1422 = vbcast.lane.b32.xlu0 %v1415, %s1421
    %v1423 = vpop.permute.xlu0 %1422
    %s1425 = sor.u32 256, 48
    %1426 = vbcast.lane.b32.xlu0 %v1415, %s1425
    %v1427 = vpop.permute.xlu0 %1426
    %s1429 = sor.u32 256, 56
    %1430 = vbcast.lane.b32.xlu0 %v1415, %s1429
    %v1431 = vpop.permute.xlu0 %1430
    %v1432 = vmul.f32 %v1376, %v1399
    %v1433 = vmul.f32 %v1377, %v1403
    %v1434 = vmul.f32 %v1378, %v1407
    %v1435 = vmul.f32 %v1379, %v1411
    %v1436 = vmul.f32 %v1380, %v1419
    %v1437 = vmul.f32 %v1381, %v1423
    %v1438 = vmul.f32 %v1382, %v1427
    %v1439 = vmul.f32 %v1383, %v1431
    %vm1440 = vcmask 1048064
    %v1441 = vsel %vm1440, %v1432, 0.0
    %v1442 = vsel %vm1440, %v1433, 0.0
    %v1443 = vadd.f32 %v1441, %v1442
    %v1444 = vsel %vm1440, %v1434, 0.0
    %v1445 = vadd.f32 %v1443, %v1444
    %v1446 = vsel %vm1440, %v1435, 0.0
    %v1447 = vadd.f32 %v1445, %v1446
    %v1448 = vrot.slane %v1447, 4
    %v1449 = vadd.f32 %v1447, %v1448
    %v1450 = vrot.slane %v1449, 2
    %v1451 = vadd.f32 %v1449, %v1450
    %v1452 = vrot.slane %v1451, 1
    %v1453 = vadd.f32 %v1451, %v1452
    %v1454 = vsel %vm1440, %v1436, 0.0
    %v1455 = vsel %vm1440, %v1437, 0.0
    %v1456 = vadd.f32 %v1454, %v1455
    %v1457 = vsel %vm1440, %v1438, 0.0
    %v1458 = vadd.f32 %v1456, %v1457
    %v1459 = vsel %vm1440, %v1439, 0.0
    %v1460 = vadd.f32 %v1458, %v1459
    %v1461 = vrot.slane %v1460, 4
    %v1462 = vadd.f32 %v1460, %v1461
    %v1463 = vrot.slane %v1462, 2
    %v1464 = vadd.f32 %v1462, %v1463
    %v1465 = vrot.slane %v1464, 1
    %v1466 = vadd.f32 %v1464, %v1465
    %v1467 = vld [vmem:[%s1 + $0x40] sm:$0x1]
    %v1468 = vrot.slane %v229, 7
    %v1470 = vrot.slane %v230, 6
    %v1472 = vsel %vm1390, %v1468, %v1470
    %v1473 = vlaneseq
    %v1474 = vshrl.u32 %v1473, 7
    %v1475 = vsub.s32 0, %v1474
    %v1476 = vrot.slane %v1467, %v1475
    %v1477 = vmul.f32 %v1476, %v1472
    %v1479 = vrot.slane %v1477, 1
    %1480 = vrot.lane.b32.xlu0 %v1477, 64
    %v1481 = vpop.permute.xlu0 %1480
    %1482 = vrot.lane.b32.xlu0 %v1479, 64
    %v1483 = vpop.permute.xlu0 %1482
    %v1486 = vadd.f32 %v1453, %v1481
    %v1487 = vadd.f32 %v1466, %v1483
    %v1489 = vrot.slane %v80, 7
    %v1492 = vrot.slane %v81, 6
    %v1494 = vsel %vm1390, %v1489, %v1492
    %v1495 = vxor.u32 %v1494, 2147483648
    %v1496 = vmul.f32 %v1495, 1.442695
    %v1497 = vpow.pop %v1496
    %v1498 = vadd.f32 %v1497, 1.0
    %v1499 = vrcp.pop %v1498
    %v1500 = vmul.f32 1.0, %v1499
    %v1501 = vmul.f32 %v1494, %v1500
    %v1503 = vrot.slane %v1501, 1
    %v1506 = vmul.f32 %v1486, %v1501
    %v1507 = vmul.f32 %v1487, %v1503
    %v1508 = vld [vmem:[%s2 + $0x48] sm:$0xff]
    %v1509 = vld [vmem:[%s2 + $0x50] sm:$0xff]
    %v1510 = vld [vmem:[%s2 + $0x58] sm:$0xff]
    %v1511 = vld [vmem:[%s2 + $0x60] sm:$0xff]
    %v1512 = vld [vmem:[%s2 + $0x68] sm:$0xff]
    %v1513 = vld [vmem:[%s2 + $0x70] sm:$0xff]
    %v1514 = vld [vmem:[%s2 + $0x78] sm:$0xff]
    %v1515 = vld [vmem:[%s2 + $0x80] sm:$0xff]
    %v1516 = vld [vmem:[%s2 + $0x88] sm:$0x1]
    %v1517 = vlaneseq
    %v1518 = vshrl.u32 %v1517, 7
    %v1519 = vsub.s32 0, %v1518
    %v1520 = vrot.slane %v1516, %v1519
    %v1523 = vrot.slane %v1507, 7
    %vm1524 = vcmask 1041409
    %v1525 = vsel %vm1524, %v1523, %v1506
    %1526 = vrot.lane.b32.xlu0 %v1525, 64
    %v1527 = vpop.permute.xlu0 %1526
    %v1528 = vsel %vm239, %v1527, 0
    %1530 = vmatprep.subr.mxu0 0.0
    %1531 = vmatpush1.msra.mxu0 %v1508
    %1532 = vmatprep.subr.mxu0 0.0
    %1533 = vmatpush1.msra.mxu0 %v1509
    %1534 = vmatprep.subr.mxu0 0.0
    %1535 = vmatpush1.msra.mxu0 %v1510
    %1536 = vmatprep.subr.mxu0 0.0
    %1537 = vmatpush1.msra.mxu0 %v1511
    %1538 = vmatprep.subr.mxu0 0.0
    %1539 = vmatpush1.msra.mxu0 %v1512
    %1540 = vmatprep.subr.mxu0 0.0
    %1541 = vmatpush1.msra.mxu0 %v1513
    %1542 = vmatprep.subr.mxu0 0.0
    %1543 = vmatpush1.msra.mxu0 %v1514
    %1544 = vmatprep.subr.mxu0 0.0
    %1545 = vmatpush1.msra.mxu0 %v1515
    %1546 = vmatprep.subr.mxu0 0.0
    %1547 = vmatpush1.msra.mxu0 0.0
    %1548 = vmatprep.subr.mxu0 0.0
    %1549 = vmatpush1.msra.mxu0 0.0
    %1550 = vmatprep.subr.mxu0 0.0
    %1551 = vmatpush1.msra.mxu0 0.0
    %1552 = vmatprep.subr.mxu0 0.0
    %1553 = vmatpush1.msra.mxu0 0.0
    %1554 = vmatprep.subr.mxu0 0.0
    %1555 = vmatpush1.msra.mxu0 0.0
    %1556 = vmatprep.subr.mxu0 0.0
    %1557 = vmatpush1.msra.mxu0 0.0
    %1558 = vmatprep.subr.mxu0 0.0
    %1559 = vmatpush1.msra.mxu0 0.0
    %1560 = vmatprep.subr.mxu0 0.0
    %1561 = vmatpush1.msra.mxu0 0.0
    %1562 = vmatprep.subr.mxu0 0.0
    %1563 = vmatpush1.msra.mxu0 0.0
    %1564 = vmatprep.subr.mxu0 0.0
    %1565 = vmatpush1.msra.mxu0 0.0
    %1566 = vmatprep.subr.mxu0 0.0
    %1567 = vmatpush1.msra.mxu0 0.0
    %1568 = vmatprep.subr.mxu0 0.0
    %1569 = vmatpush1.msra.mxu0 0.0
    %1570 = vmatprep.subr.mxu0 0.0
    %1571 = vmatpush1.msra.mxu0 0.0
    %1572 = vmatprep.subr.mxu0 0.0
    %1573 = vmatpush1.msra.mxu0 0.0
    %1574 = vmatprep.subr.mxu0 0.0
    %1575 = vmatpush1.msra.mxu0 0.0
    %1576 = vmatprep.subr.mxu0 0.0
    %1577 = vmatpush1.msra.mxu0 0.0
    %1578 = vmatprep.subr.mxu0 0.0
    %1579 = vmatpush1.msra.mxu0 0.0
    %1580 = vmatprep.subr.mxu0 0.0
    %1581 = vmatpush1.msra.mxu0 0.0
    %1582 = vmatprep.subr.mxu0 0.0
    %1583 = vmatpush1.msra.mxu0 0.0
    %1584 = vmatprep.subr.mxu0 0.0
    %1585 = vmatpush1.msra.mxu0 0.0
    %1586 = vmatprep.subr.mxu0 0.0
    %1587 = vmatpush1.msra.mxu0 0.0
    %1588 = vmatprep.subr.mxu0 0.0
    %1589 = vmatpush1.msra.mxu0 0.0
    %1590 = vmatprep.subr.mxu0 0.0
    %1591 = vmatpush1.msra.mxu0 0.0
    %1592 = vmatprep.subr.mxu0 0.0
    %1593 = vmatpush1.msra.mxu0 0.0
    %1594 = vmatprep.mubr.f32.mxu0 0.0
    %1595 = vmatmul.mubr.f32.gmra.mrb[0].mxu0 %v1528
    %v1596 = vpop.f32.mrb[0].mxu0
    %v1597 = vadd.f32 %v1520, %v1596
    %v1598 = vpop.f32.mrb[0].mxu0
    %1599 = vdwg.mxu0
    %vm1600 = vcmask 9216
    %1601 = vst.msk [vmem:[#allocation2] sm:$0x3] %vm1600, %v1597
    // Predicated region
    $region14: #{tpu_custom_call.1} parent=1 // pred_check
      _
    $region15: #{tpu_custom_call.1} parent=1 // pred_check_branch
      %1603 = sbr.rel (0) target = $region17
    $region16: #{tpu_custom_call.1} parent=1 // pred_region
      %s1605 = ssub.s32 32, 32
      %1606 = vsyncadd [#allocation3], %s1605
      %s1608 = sshll.u32 [#allocation2], 4
      %s1609 = int_to_ptr.vmem [resolvable:$true] %s1608
      %1611 = dma.vmem_to_hbm [thread:$0]  %s1609, 32, %s3, [#allocation3]
    $region17: #{tpu_custom_call.1} parent=1 // pred_fallthru
      _
    // Predicated region
    $region18: #{tpu_custom_call.1} parent=1 // pred_check
      _
    $region19: #{tpu_custom_call.1} parent=1 // pred_check_branch
      %1613 = sbr.rel (0) target = $region21
    $region20: #{tpu_custom_call.1} parent=1 // pred_region
      %1614 = dma.done [#allocation3], 32
    $region21: #{tpu_custom_call.1} parent=1 // pred_fallthru
      _
    %1615 = vsyncpa [#allocation3], 1

</llo_original>
